<compile_context>
chip_gen: v7x
topology: tpu7x:2x2x1
jax: 0.10.0
libtpu: 0.0.40
codegen_flags: <defaults>
</compile_context>

<pallas_src>
import jax
import jax.numpy as jnp
from jax.experimental import pallas as pl
from jax.experimental.pallas import tpu as pltpu

LN_EPS = 1e-5  # PyTorch nn.LayerNorm default


def _layernorm(x, gamma, beta):
    mu = jnp.mean(x, axis=-1, keepdims=True)
    var = jnp.mean((x - mu) ** 2, axis=-1, keepdims=True)  # biased, like torch
    return (x - mu) * jax.lax.rsqrt(var + LN_EPS) * gamma + beta


# ----------------------------------------------------------------------------
# Kernel body.
#   s_ref:(TB,S) f32   g_ref:(TB,P) f32   noise_ref:(TB,O) f32  (prior sample)
#   w1s:(S,4O) bf16    w1g:(P,4O) bf16    wc1:(S,S//2) bf16     w2:(4O,O) bf16
#   pe:(3,4O) f32  = [ln1_gamma; ln1_beta; b2 (lane-padded)]
#   pc:(4,S//2) f32 = [lnc_gamma; lnc_beta; wc2; bc2 (lane-padded)]
# ----------------------------------------------------------------------------
def vbb_kernel(s_ref, g_ref, noise_ref, w1s_ref, w1g_ref, wc1_ref, w2_ref,
               pe_ref, pc_ref, out_ref):
    out_size = w2_ref.shape[1]

    s = s_ref[...].astype(jnp.bfloat16)                        # (TB, S)
    g = g_ref[...].astype(jnp.bfloat16)                        # (TB, P)

    # Encoder first layer (bias-free): cat([s,g]) @ W1 == s @ W1s + g @ W1g.
    h = (jnp.dot(s, w1s_ref[...], preferred_element_type=jnp.float32)
         + jnp.dot(g, w1g_ref[...], preferred_element_type=jnp.float32))
    h = _layernorm(h, pe_ref[0:1, :], pe_ref[1:2, :])
    h = jnp.maximum(h, 0.0)
    priv_logits = (
        jnp.dot(h.astype(jnp.bfloat16), w2_ref[...],
                preferred_element_type=jnp.float32)
        + pe_ref[2:3, :out_size]
    )                                                          # (TB, O)

    # Channel-capacity net: Linear -> LayerNorm -> ReLU -> Linear(->1) as a
    # lane reduction (avoids a width-1 matmul output).
    hc = jnp.dot(s, wc1_ref[...], preferred_element_type=jnp.float32)
    hc = _layernorm(hc, pc_ref[0:1, :], pc_ref[1:2, :])
    hc = jnp.maximum(hc, 0.0)
    d_cap_logits = (
        jnp.sum(hc * pc_ref[2:3, :], axis=-1, keepdims=True) + pc_ref[3:4, 0:1]
    )                                                          # (TB, 1)

    d_cap = jax.nn.sigmoid(d_cap_logits)                       # (TB, 1)
    priv = jax.nn.sigmoid(priv_logits)                         # (TB, O)

    out = d_cap * priv + (1.0 - d_cap) * noise_ref[...]
    out_ref[...] = out.astype(out_ref.dtype)


# ----------------------------------------------------------------------------
# Parameter packing: bf16 weight matrices + two small f32 tables.
# ----------------------------------------------------------------------------
def _pack_params(p, state_size):
    hid, out_size = p["w2"].shape
    chid = p["wc1"].shape[1]
    w1s = p["w1"][:state_size].astype(jnp.bfloat16)            # (S, 4*O)
    w1g = p["w1"][state_size:].astype(jnp.bfloat16)            # (P, 4*O)
    wc1 = p["wc1"].astype(jnp.bfloat16)                        # (S, S//2)
    w2 = p["w2"].astype(jnp.bfloat16)                          # (4*O, O)
    pe = jnp.concatenate(
        [p["ln1_g"], p["ln1_b"],
         jnp.pad(p["b2"], ((0, 0), (0, hid - out_size)))], axis=0)      # (3, 4*O)
    pc = jnp.concatenate(
        [p["lnc_g"], p["lnc_b"], p["wc2"],
         jnp.pad(p["bc2"], ((0, 0), (0, chid - 1)))], axis=0)           # (4, S//2)
    return w1s, w1g, wc1, w2, pe, pc


def _round_up(x, m):
    return ((x + m - 1) // m) * m


def _pick_tile(B, block_b):
    """Batch tile: multiple of 8, <= block_b, and >= 2 grid blocks when
    possible so v7x's two TensorCores both get work (no-op on v5e/v6e)."""
    if B <= 8:
        return B
    tb = min(_round_up(block_b, 8), _round_up(pl.cdiv(B, 2), 8))
    return max(tb, 8)


# ----------------------------------------------------------------------------
# Host wrapper.
# ----------------------------------------------------------------------------
def vbb_forward(s, g, noise, params, *, block_b=1024, out_dtype=jnp.float32):
    B, S = s.shape
    P = g.shape[1]
    hid, out_size = params["w2"].shape
    chid = params["wc1"].shape[1]
    assert noise.shape == (B, out_size)
    assert P == out_size, (
        "VBBLayer broadcast semantics require privileged_size == output_size")

    w1s, w1g, wc1, w2, pe, pc = _pack_params(params, S)

    tb = _pick_tile(B, block_b)
    n_blocks = pl.cdiv(B, tb)
    Bp = n_blocks * tb
    if Bp != B:
        pad = ((0, Bp - B), (0, 0))
        s = jnp.pad(s, pad)
        g = jnp.pad(g, pad)
        noise = jnp.pad(noise, pad)

    def act_spec(feat):
        return pl.BlockSpec((tb, feat), lambda i: (i, 0))

    def full_spec(shape):
        return pl.BlockSpec(shape, lambda i: (0, 0))

    # Advisory cost estimate so XLA schedules/overlaps this tiny call sensibly.
    mm_macs = S * hid + P * hid + S * chid + hid * out_size
    flops = 2 * Bp * mm_macs
    weight_bytes = 2 * mm_macs + 4 * (3 * hid + 4 * chid)
    bytes_accessed = (4 * Bp * (S + P + out_size)
                      + Bp * out_size * jnp.dtype(out_dtype).itemsize
                      + weight_bytes)
    transcendentals = Bp * (out_size + 3)

    fn = pl.pallas_call(
        vbb_kernel,
        out_shape=jax.ShapeDtypeStruct((Bp, out_size), out_dtype),
        grid=(n_blocks,),
        in_specs=[
            act_spec(S),                    # s
            act_spec(P),                    # g
            act_spec(out_size),             # prior noise
            full_spec((S, hid)),            # W1[:S]      (resident)
            full_spec((P, hid)),            # W1[S:]      (resident)
            full_spec((S, chid)),           # Wc1         (resident)
            full_spec((hid, out_size)),     # W2          (resident)
            full_spec((3, hid)),            # ln1 gamma/beta, b2
            full_spec((4, chid)),           # lnc gamma/beta, wc2, bc2
        ],
        out_specs=pl.BlockSpec((tb, out_size), lambda i: (i, 0)),
        compiler_params=pltpu.CompilerParams(
            dimension_semantics=("parallel",)),
        cost_estimate=pl.CostEstimate(
            flops=flops, transcendentals=transcendentals,
            bytes_accessed=bytes_accessed),
    )
    out = fn(s, g, noise, w1s, w1g, wc1, w2, pe, pc)
    return out[:B]


# ----------------------------------------------------------------------------
# Module parameters (PyTorch Linear weights stored transposed as (in, out)).
# ----------------------------------------------------------------------------
def init_params(key, state_size, priv_size, output_size):
    ks = jax.random.split(key, 6)
    hid = 4 * output_size
    chid = state_size // 2
    scale = 0.1
    return {
        # encoder
        "w1": scale * jax.random.normal(ks[0], (state_size + priv_size, hid), jnp.float32),
        "ln1_g": jnp.ones((1, hid), jnp.float32),
        "ln1_b": jnp.zeros((1, hid), jnp.float32),
        "w2": scale * jax.random.normal(ks[1], (hid, output_size), jnp.float32),
        "b2": scale * jax.random.normal(ks[2], (1, output_size), jnp.float32),
        # channel_cap_network
        "wc1": scale * jax.random.normal(ks[3], (state_size, chid), jnp.float32),
        "lnc_g": jnp.ones((1, chid), jnp.float32),
        "lnc_b": jnp.zeros((1, chid), jnp.float32),
        "wc2": scale * jax.random.normal(ks[4], (1, chid), jnp.float32),
        "bc2": scale * jax.random.normal(ks[5], (1, 1), jnp.float32),
    }


# ----------------------------------------------------------------------------
# Pure-JAX reference (same bf16 matmul operands / split-dot structure as the
# kernel so the comparison is tight).
# ----------------------------------------------------------------------------
def _ref_gates(s, g, p):
    S = s.shape[1]
    sb = s.astype(jnp.bfloat16)
    gb = g.astype(jnp.bfloat16)
    w1s = p["w1"][:S].astype(jnp.bfloat16)
    w1g = p["w1"][S:].astype(jnp.bfloat16)
    h = (jnp.dot(sb, w1s, preferred_element_type=jnp.float32)
         + jnp.dot(gb, w1g, preferred_element_type=jnp.float32))
    h = _layernorm(h, p["ln1_g"], p["ln1_b"])
    h = jnp.maximum(h, 0.0)
    priv_logits = jnp.dot(h.astype(jnp.bfloat16), p["w2"].astype(jnp.bfloat16),
                          preferred_element_type=jnp.float32) + p["b2"]
    hc = jnp.dot(sb, p["wc1"].astype(jnp.bfloat16),
                 preferred_element_type=jnp.float32)
    hc = _layernorm(hc, p["lnc_g"], p["lnc_b"])
    hc = jnp.maximum(hc, 0.0)
    d_cap_logits = jnp.sum(hc * p["wc2"], axis=-1, keepdims=True) + p["bc2"]
    return jax.nn.sigmoid(d_cap_logits), jax.nn.sigmoid(priv_logits)


def vbb_reference(s, g, noise, p):
    d_cap, priv = _ref_gates(s, g, p)
    return d_cap * priv + (1.0 - d_cap) * noise


if __name__ == "__main__":
    key = jax.random.PRNGKey(0)
    k_param, k_s, k_g, k_n = jax.random.split(key, 4)

    batch = 256
    state_size = 32
    privileged_size = 16
    output_size = 16  # must equal privileged_size (see note above)

    params = init_params(k_param, state_size, privileged_size, output_size)
    s = jax.random.normal(k_s, (batch, state_size), jnp.float32)
    g = jax.random.normal(k_g, (batch, privileged_size), jnp.float32)
    # prior(s).sample(): standard normal, sampled once in the wrapper.
    noise = jax.random.normal(k_n, (batch, output_size), jnp.float32)

    out = vbb_forward(s, g, noise, params, block_b=1024)
    out = jax.block_until_ready(out)
    assert out.shape == (batch, output_size)
    assert bool(jnp.all(jnp.isfinite(out)))

    ref = vbb_reference(s, g, noise, params)
    assert jnp.allclose(out, ref, atol=2e-3, rtol=2e-3), \
        "mismatch vs JAX reference"

    print("KERNEL_OK")
</pallas_src>

<mosaic_0001>
module attributes {stable_mosaic.version = 11 : i64} {
  func.func @vbb_kernel(%arg0: i32, %arg1: memref<128x32xf32, #tpu.memory_space<vmem>>, %arg2: memref<128x16xf32, #tpu.memory_space<vmem>>, %arg3: memref<128x16xf32, #tpu.memory_space<vmem>>, %arg4: memref<32x64xbf16, #tpu.memory_space<vmem>>, %arg5: memref<16x64xbf16, #tpu.memory_space<vmem>>, %arg6: memref<32x16xbf16, #tpu.memory_space<vmem>>, %arg7: memref<64x16xbf16, #tpu.memory_space<vmem>>, %arg8: memref<3x64xf32, #tpu.memory_space<vmem>>, %arg9: memref<4x16xf32, #tpu.memory_space<vmem>>, %arg10: memref<128x16xf32, #tpu.memory_space<vmem>>) attributes {dimension_semantics = [#tpu.dimension_semantics<parallel>], iteration_bounds = array<i64: 2>, scalar_prefetch = 0 : i64, scratch_operands = 0 : i64, tpu.core_type = #tpu.core_type<tc>, window_params = [{transform_indices = @transform_0, window_bounds = array<i64: 128, 32>}, {transform_indices = @transform_1, window_bounds = array<i64: 128, 16>}, {transform_indices = @transform_2, window_bounds = array<i64: 128, 16>}, {pipeline_mode = #tpu.pipeline_mode<synchronous>, transform_indices = @transform_3, window_bounds = array<i64: 32, 64>}, {pipeline_mode = #tpu.pipeline_mode<synchronous>, transform_indices = @transform_4, window_bounds = array<i64: 16, 64>}, {pipeline_mode = #tpu.pipeline_mode<synchronous>, transform_indices = @transform_5, window_bounds = array<i64: 32, 16>}, {pipeline_mode = #tpu.pipeline_mode<synchronous>, transform_indices = @transform_6, window_bounds = array<i64: 64, 16>}, {pipeline_mode = #tpu.pipeline_mode<synchronous>, transform_indices = @transform_7, window_bounds = array<i64: 3, 64>}, {pipeline_mode = #tpu.pipeline_mode<synchronous>, transform_indices = @transform_8, window_bounds = array<i64: 4, 16>}, {transform_indices = @transform_9, window_bounds = array<i64: 128, 16>}]} {
    %c0 = arith.constant 0 : index
    %c0_0 = arith.constant 0 : index
    %0 = vector.load %arg1[%c0, %c0_0] : memref<128x32xf32, #tpu.memory_space<vmem>>, vector<128x32xf32>
    %1 = arith.truncf %0 : vector<128x32xf32> to vector<128x32xbf16>
    %c0_1 = arith.constant 0 : index
    %c0_2 = arith.constant 0 : index
    %2 = vector.load %arg2[%c0_1, %c0_2] : memref<128x16xf32, #tpu.memory_space<vmem>>, vector<128x16xf32>
    %3 = arith.truncf %2 : vector<128x16xf32> to vector<128x16xbf16>
    %c0_3 = arith.constant 0 : index
    %c0_4 = arith.constant 0 : index
    %4 = vector.load %arg4[%c0_3, %c0_4] : memref<32x64xbf16, #tpu.memory_space<vmem>>, vector<32x64xbf16>
    %cst = arith.constant dense<0.000000e+00> : vector<128x64xf32>
    %5 = tpu.matmul %1, %4, %cst {dimension_numbers = #tpu.dot_dimension_numbers<[1], [0], [0], [1], [0, 0, 1, 1], [], []>} : vector<128x32xbf16>, vector<32x64xbf16>, vector<128x64xf32> -> vector<128x64xf32>
    %c0_5 = arith.constant 0 : index
    %c0_6 = arith.constant 0 : index
    %6 = vector.load %arg5[%c0_5, %c0_6] : memref<16x64xbf16, #tpu.memory_space<vmem>>, vector<16x64xbf16>
    %cst_7 = arith.constant dense<0.000000e+00> : vector<128x64xf32>
    %7 = tpu.matmul %3, %6, %cst_7 {dimension_numbers = #tpu.dot_dimension_numbers<[1], [0], [0], [1], [0, 0, 1, 1], [], []>} : vector<128x16xbf16>, vector<16x64xbf16>, vector<128x64xf32> -> vector<128x64xf32>
    %8 = arith.addf %5, %7 : vector<128x64xf32>
    %c0_8 = arith.constant 0 : index
    %c0_9 = arith.constant 0 : index
    %9 = vector.load %arg8[%c0_8, %c0_9] : memref<3x64xf32, #tpu.memory_space<vmem>>, vector<1x64xf32>
    %c1 = arith.constant 1 : index
    %c0_10 = arith.constant 0 : index
    %10 = vector.load %arg8[%c1, %c0_10] : memref<3x64xf32, #tpu.memory_space<vmem>>, vector<1x64xf32>
    %cst_11 = arith.constant dense<0.000000e+00> : vector<128xf32>
    %11 = vector.multi_reduction <add>, %8, %cst_11 [1] : vector<128x64xf32> to vector<128xf32>
    %12 = vector.shape_cast %11 : vector<128xf32> to vector<128x1xf32>
    %cst_12 = arith.constant 6.400000e+01 : f32
    %13 = vector.broadcast %cst_12 : f32 to vector<128x1xf32>
    %14 = arith.divf %12, %13 : vector<128x1xf32>
    %15 = vector.broadcast %14 : vector<128x1xf32> to vector<128x64xf32>
    %16 = arith.subf %8, %15 : vector<128x64xf32>
    %17 = arith.mulf %16, %16 : vector<128x64xf32>
    %cst_13 = arith.constant dense<0.000000e+00> : vector<128xf32>
    %18 = vector.multi_reduction <add>, %17, %cst_13 [1] : vector<128x64xf32> to vector<128xf32>
    %19 = vector.shape_cast %18 : vector<128xf32> to vector<128x1xf32>
    %cst_14 = arith.constant 6.400000e+01 : f32
    %20 = vector.broadcast %cst_14 : f32 to vector<128x1xf32>
    %21 = arith.divf %19, %20 : vector<128x1xf32>
    %22 = vector.broadcast %14 : vector<128x1xf32> to vector<128x64xf32>
    %23 = arith.subf %8, %22 : vector<128x64xf32>
    %cst_15 = arith.constant 9.99999974E-6 : f32
    %24 = vector.broadcast %cst_15 : f32 to vector<128x1xf32>
    %25 = arith.addf %21, %24 : vector<128x1xf32>
    %26 = math.rsqrt %25 : vector<128x1xf32>
    %27 = vector.broadcast %26 : vector<128x1xf32> to vector<128x64xf32>
    %28 = arith.mulf %23, %27 : vector<128x64xf32>
    %29 = vector.broadcast %9 : vector<1x64xf32> to vector<128x64xf32>
    %30 = arith.mulf %28, %29 : vector<128x64xf32>
    %31 = vector.broadcast %10 : vector<1x64xf32> to vector<128x64xf32>
    %32 = arith.addf %30, %31 : vector<128x64xf32>
    %cst_16 = arith.constant 0.000000e+00 : f32
    %33 = vector.broadcast %cst_16 : f32 to vector<128x64xf32>
    %34 = arith.maximumf %32, %33 : vector<128x64xf32>
    %35 = arith.truncf %34 : vector<128x64xf32> to vector<128x64xbf16>
    %c0_17 = arith.constant 0 : index
    %c0_18 = arith.constant 0 : index
    %36 = vector.load %arg7[%c0_17, %c0_18] : memref<64x16xbf16, #tpu.memory_space<vmem>>, vector<64x16xbf16>
    %cst_19 = arith.constant dense<0.000000e+00> : vector<128x16xf32>
    %37 = tpu.matmul %35, %36, %cst_19 {dimension_numbers = #tpu.dot_dimension_numbers<[1], [0], [0], [1], [0, 0, 1, 1], [], []>} : vector<128x64xbf16>, vector<64x16xbf16>, vector<128x16xf32> -> vector<128x16xf32>
    %c2 = arith.constant 2 : index
    %c0_20 = arith.constant 0 : index
    %38 = vector.load %arg8[%c2, %c0_20] : memref<3x64xf32, #tpu.memory_space<vmem>>, vector<1x16xf32>
    %39 = vector.broadcast %38 : vector<1x16xf32> to vector<128x16xf32>
    %40 = arith.addf %37, %39 : vector<128x16xf32>
    %c0_21 = arith.constant 0 : index
    %c0_22 = arith.constant 0 : index
    %41 = vector.load %arg6[%c0_21, %c0_22] : memref<32x16xbf16, #tpu.memory_space<vmem>>, vector<32x16xbf16>
    %cst_23 = arith.constant dense<0.000000e+00> : vector<128x16xf32>
    %42 = tpu.matmul %1, %41, %cst_23 {dimension_numbers = #tpu.dot_dimension_numbers<[1], [0], [0], [1], [0, 0, 1, 1], [], []>} : vector<128x32xbf16>, vector<32x16xbf16>, vector<128x16xf32> -> vector<128x16xf32>
    %c0_24 = arith.constant 0 : index
    %c0_25 = arith.constant 0 : index
    %43 = vector.load %arg9[%c0_24, %c0_25] : memref<4x16xf32, #tpu.memory_space<vmem>>, vector<1x16xf32>
    %c1_26 = arith.constant 1 : index
    %c0_27 = arith.constant 0 : index
    %44 = vector.load %arg9[%c1_26, %c0_27] : memref<4x16xf32, #tpu.memory_space<vmem>>, vector<1x16xf32>
    %cst_28 = arith.constant dense<0.000000e+00> : vector<128xf32>
    %45 = vector.multi_reduction <add>, %42, %cst_28 [1] : vector<128x16xf32> to vector<128xf32>
    %46 = vector.shape_cast %45 : vector<128xf32> to vector<128x1xf32>
    %cst_29 = arith.constant 1.600000e+01 : f32
    %47 = vector.broadcast %cst_29 : f32 to vector<128x1xf32>
    %48 = arith.divf %46, %47 : vector<128x1xf32>
    %49 = vector.broadcast %48 : vector<128x1xf32> to vector<128x16xf32>
    %50 = arith.subf %42, %49 : vector<128x16xf32>
    %51 = arith.mulf %50, %50 : vector<128x16xf32>
    %cst_30 = arith.constant dense<0.000000e+00> : vector<128xf32>
    %52 = vector.multi_reduction <add>, %51, %cst_30 [1] : vector<128x16xf32> to vector<128xf32>
    %53 = vector.shape_cast %52 : vector<128xf32> to vector<128x1xf32>
    %cst_31 = arith.constant 1.600000e+01 : f32
    %54 = vector.broadcast %cst_31 : f32 to vector<128x1xf32>
    %55 = arith.divf %53, %54 : vector<128x1xf32>
    %56 = vector.broadcast %48 : vector<128x1xf32> to vector<128x16xf32>
    %57 = arith.subf %42, %56 : vector<128x16xf32>
    %cst_32 = arith.constant 9.99999974E-6 : f32
    %58 = vector.broadcast %cst_32 : f32 to vector<128x1xf32>
    %59 = arith.addf %55, %58 : vector<128x1xf32>
    %60 = math.rsqrt %59 : vector<128x1xf32>
    %61 = vector.broadcast %60 : vector<128x1xf32> to vector<128x16xf32>
    %62 = arith.mulf %57, %61 : vector<128x16xf32>
    %63 = vector.broadcast %43 : vector<1x16xf32> to vector<128x16xf32>
    %64 = arith.mulf %62, %63 : vector<128x16xf32>
    %65 = vector.broadcast %44 : vector<1x16xf32> to vector<128x16xf32>
    %66 = arith.addf %64, %65 : vector<128x16xf32>
    %cst_33 = arith.constant 0.000000e+00 : f32
    %67 = vector.broadcast %cst_33 : f32 to vector<128x16xf32>
    %68 = arith.maximumf %66, %67 : vector<128x16xf32>
    %c2_34 = arith.constant 2 : index
    %c0_35 = arith.constant 0 : index
    %69 = vector.load %arg9[%c2_34, %c0_35] : memref<4x16xf32, #tpu.memory_space<vmem>>, vector<1x16xf32>
    %70 = vector.broadcast %69 : vector<1x16xf32> to vector<128x16xf32>
    %71 = arith.mulf %68, %70 : vector<128x16xf32>
    %cst_36 = arith.constant dense<0.000000e+00> : vector<128xf32>
    %72 = vector.multi_reduction <add>, %71, %cst_36 [1] : vector<128x16xf32> to vector<128xf32>
    %73 = vector.shape_cast %72 : vector<128xf32> to vector<128x1xf32>
    %c3 = arith.constant 3 : index
    %c0_37 = arith.constant 0 : index
    %74 = vector.load %arg9[%c3, %c0_37] : memref<4x16xf32, #tpu.memory_space<vmem>>, vector<1x1xf32>
    %75 = vector.broadcast %74 : vector<1x1xf32> to vector<128x1xf32>
    %76 = arith.addf %73, %75 : vector<128x1xf32>
    %77 = arith.negf %76 : vector<128x1xf32>
    %78 = math.exp %77 : vector<128x1xf32>
    %cst_38 = arith.constant 1.000000e+00 : f32
    %79 = vector.broadcast %cst_38 : f32 to vector<128x1xf32>
    %80 = arith.addf %79, %78 : vector<128x1xf32>
    %81 = arith.divf %79, %80 : vector<128x1xf32>
    %82 = arith.negf %40 : vector<128x16xf32>
    %83 = math.exp %82 : vector<128x16xf32>
    %cst_39 = arith.constant 1.000000e+00 : f32
    %84 = vector.broadcast %cst_39 : f32 to vector<128x16xf32>
    %85 = arith.addf %84, %83 : vector<128x16xf32>
    %86 = arith.divf %84, %85 : vector<128x16xf32>
    %87 = vector.broadcast %81 : vector<128x1xf32> to vector<128x16xf32>
    %88 = arith.mulf %87, %86 : vector<128x16xf32>
    %cst_40 = arith.constant 1.000000e+00 : f32
    %89 = vector.broadcast %cst_40 : f32 to vector<128x1xf32>
    %90 = arith.subf %89, %81 : vector<128x1xf32>
    %c0_41 = arith.constant 0 : index
    %c0_42 = arith.constant 0 : index
    %91 = vector.load %arg3[%c0_41, %c0_42] : memref<128x16xf32, #tpu.memory_space<vmem>>, vector<128x16xf32>
    %92 = vector.broadcast %90 : vector<128x1xf32> to vector<128x16xf32>
    %93 = arith.mulf %92, %91 : vector<128x16xf32>
    %94 = arith.addf %88, %93 : vector<128x16xf32>
    %c0_43 = arith.constant 0 : index
    %c0_44 = arith.constant 0 : index
    %95 = vector.load %arg10[%c0_43, %c0_44] : memref<128x16xf32, #tpu.memory_space<vmem>>, vector<128x16xf32>
    tpu.vector_store %arg10[%c0_43, %c0_44], %94 {strides = array<i32>} : memref<128x16xf32, #tpu.memory_space<vmem>>, vector<128x16xf32>,
    return
  }
  func.func @transform_0(%arg0: i32) -> (i32, i32) {
    %c0_i32 = arith.constant 0 : i32
    %c0_i32_0 = arith.constant 0 : i32
    return %arg0, %c0_i32 : i32, i32
  }
  func.func @transform_1(%arg0: i32) -> (i32, i32) {
    %c0_i32 = arith.constant 0 : i32
    %c0_i32_0 = arith.constant 0 : i32
    return %arg0, %c0_i32 : i32, i32
  }
  func.func @transform_2(%arg0: i32) -> (i32, i32) {
    %c0_i32 = arith.constant 0 : i32
    %c0_i32_0 = arith.constant 0 : i32
    return %arg0, %c0_i32 : i32, i32
  }
  func.func @transform_3(%arg0: i32) -> (i32, i32) {
    %c0_i32 = arith.constant 0 : i32
    %c0_i32_0 = arith.constant 0 : i32
    %c0_i32_1 = arith.constant 0 : i32
    return %c0_i32, %c0_i32_0 : i32, i32
  }
  func.func @transform_4(%arg0: i32) -> (i32, i32) {
    %c0_i32 = arith.constant 0 : i32
    %c0_i32_0 = arith.constant 0 : i32
    %c0_i32_1 = arith.constant 0 : i32
    return %c0_i32, %c0_i32_0 : i32, i32
  }
  func.func @transform_5(%arg0: i32) -> (i32, i32) {
    %c0_i32 = arith.constant 0 : i32
    %c0_i32_0 = arith.constant 0 : i32
    %c0_i32_1 = arith.constant 0 : i32
    return %c0_i32, %c0_i32_0 : i32, i32
  }
  func.func @transform_6(%arg0: i32) -> (i32, i32) {
    %c0_i32 = arith.constant 0 : i32
    %c0_i32_0 = arith.constant 0 : i32
    %c0_i32_1 = arith.constant 0 : i32
    return %c0_i32, %c0_i32_0 : i32, i32
  }
  func.func @transform_7(%arg0: i32) -> (i32, i32) {
    %c0_i32 = arith.constant 0 : i32
    %c0_i32_0 = arith.constant 0 : i32
    %c0_i32_1 = arith.constant 0 : i32
    return %c0_i32, %c0_i32_0 : i32, i32
  }
  func.func @transform_8(%arg0: i32) -> (i32, i32) {
    %c0_i32 = arith.constant 0 : i32
    %c0_i32_0 = arith.constant 0 : i32
    %c0_i32_1 = arith.constant 0 : i32
    return %c0_i32, %c0_i32_0 : i32, i32
  }
  func.func @transform_9(%arg0: i32) -> (i32, i32) {
    %c0_i32 = arith.constant 0 : i32
    %c0_i32_0 = arith.constant 0 : i32
    return %arg0, %c0_i32 : i32, i32
  }
}

</mosaic_0001>

<llo_original>
// kernel: tpu_custom_call.1
$region0: #{tpu_custom_call.1}
  #allocation0 [shape = 'u32[]', space=smem, size = 0x4, offset = 0x4, fixed_abs, tag = 'smem constant byte address 0x4 - core index']
  #allocation1 [shape = 'u32[144,128]{1,0:T(1,128)}', space=vmem, size = 0x12000, scoped, tag = 'internal scratch']
  %s0 = inlined_call_operand.vmem [shape: f32[256,32], index: 0, kind: input, shape index: {}]
  %s1 = inlined_call_operand.vmem [shape: f32[256,16], index: 1, kind: input, shape index: {}]
  %s2 = inlined_call_operand.vmem [shape: f32[256,16], index: 2, kind: input, shape index: {}]
  %s3 = inlined_call_operand.vmem [shape: bf16[32,64], index: 3, kind: input, shape index: {}]
  %s4 = inlined_call_operand.vmem [shape: bf16[16,64], index: 4, kind: input, shape index: {}]
  %s5 = inlined_call_operand.vmem [shape: bf16[32,16], index: 5, kind: input, shape index: {}]
  %s6 = inlined_call_operand.vmem [shape: bf16[64,16], index: 6, kind: input, shape index: {}]
  %s7 = inlined_call_operand.vmem [shape: f32[3,64], index: 7, kind: input, shape index: {}]
  %s8 = inlined_call_operand.vmem [shape: f32[4,16], index: 8, kind: input, shape index: {}]
  %s9 = inlined_call_operand.vmem [shape: f32[256,16], index: 9, kind: output, shape index: {}]
  %s10 = sld [smem:[#allocation0]]
  $region69: #{tpu_custom_call.1} parent=0
    _
  %s12 = ssub.s32 1, %s10
  %s13 = scalar_select 0, %s12, %s10
  loop: start=0, step=1, limit=4
  $region2: #{tpu_custom_call.1} parent=0 // loop_pre_header
    _
  $region3: #{tpu_custom_call.1} parent=0 // loop_header
    %s15 = sphi 0, %s19
    %p16 = scmp.ge.s32.totalorder %s15, 4
    %s25 = sphi 0, %s27
    %s28 = sphi 0, %s25
    %s29 = sphi 0, %s28
    %s45 = sphi 0, %s29
    %s51 = sphi 0, %s53
    %s54 = sphi 0, %s51
    %s55 = sphi 0, %s54
    %s71 = sphi 0, %s55
    %s77 = sphi 0, %s79
    %s80 = sphi 0, %s77
    %s81 = sphi 0, %s80
    %s97 = sphi 0, %s81
    %s101 = sphi 0, %s101
    %s103 = sphi 0, %s101
    %s104 = sphi 0, %s103
    %s118 = sphi 0, %s104
    %s122 = sphi 0, %s122
    %s124 = sphi 0, %s122
    %s125 = sphi 0, %s124
    %s139 = sphi 0, %s125
    %s143 = sphi 0, %s143
    %s145 = sphi 0, %s143
    %s146 = sphi 0, %s145
    %s160 = sphi 0, %s146
    %s164 = sphi 0, %s164
    %s166 = sphi 0, %s164
    %s167 = sphi 0, %s166
    %s181 = sphi 0, %s167
    %s185 = sphi 0, %s185
    %s187 = sphi 0, %s185
    %s188 = sphi 0, %s187
    %s202 = sphi 0, %s188
    %s206 = sphi 0, %s206
    %s208 = sphi 0, %s206
    %s209 = sphi 0, %s208
    %s223 = sphi 0, %s209
    %s229 = sphi 0, %s231
    %s232 = sphi 0, %s229
    %s233 = sphi 0, %s232
    %s249 = sphi 0, %s233
  $region4: #{tpu_custom_call.1} parent=0 // loop_header_branch
    %18 = sbr.rel (%p16) target = $region8
  $region5: #{tpu_custom_call.1} parent=0 // loop_body
    %s20 = ssub.s32 %s15, 1
    %s21 = ssub.s32 %s15, 2
    %s22 = sadd.s32 %s15, 1
    %s23 = ssub.s32 %s15, %s22
    %p24 = scmp.eq.s32.totalorder %s23, 0
    %s26 = sadd.s32 %s25, 1
    %s27 = scalar_select %p24, %s25, %s26
    %p30 = pneg %p24
    %p31 = scmp.eq.s32.totalorder %s15, 1
    %p32 = por %p30, %p31
    %p33 = scmp.ne.s32.totalorder %s25, %s28
    %p34 = scmp.eq.s32.totalorder %s15, 0
    %p35 = por %p33, %p34
    %p36 = scmp.ne.s32.totalorder %s25, %s28
    %p37 = scmp.eq.s32.totalorder %s20, 1
    %p38 = por %p36, %p37
    %p39 = scmp.ne.s32.totalorder %s28, %s29
    %p40 = scmp.eq.s32.totalorder %s20, 0
    %p41 = por %p39, %p40
    %p42 = scmp.ne.s32.totalorder %s28, %s29
    %p43 = scmp.eq.s32.totalorder %s21, 1
    %p44 = por %p42, %p43
    %p46 = scmp.ne.s32.totalorder %s29, %s45
    %p47 = scmp.eq.s32.totalorder %s21, 0
    %p48 = por %p46, %p47
    %s49 = ssub.s32 %s15, %s22
    %p50 = scmp.eq.s32.totalorder %s49, 0
    %s52 = sadd.s32 %s51, 1
    %s53 = scalar_select %p50, %s51, %s52
    %p56 = pneg %p50
    %p57 = scmp.eq.s32.totalorder %s15, 1
    %p58 = por %p56, %p57
    %p59 = scmp.ne.s32.totalorder %s51, %s54
    %p60 = scmp.eq.s32.totalorder %s15, 0
    %p61 = por %p59, %p60
    %p62 = scmp.ne.s32.totalorder %s51, %s54
    %p63 = scmp.eq.s32.totalorder %s20, 1
    %p64 = por %p62, %p63
    %p65 = scmp.ne.s32.totalorder %s54, %s55
    %p66 = scmp.eq.s32.totalorder %s20, 0
    %p67 = por %p65, %p66
    %p68 = scmp.ne.s32.totalorder %s54, %s55
    %p69 = scmp.eq.s32.totalorder %s21, 1
    %p70 = por %p68, %p69
    %p72 = scmp.ne.s32.totalorder %s55, %s71
    %p73 = scmp.eq.s32.totalorder %s21, 0
    %p74 = por %p72, %p73
    %s75 = ssub.s32 %s15, %s22
    %p76 = scmp.eq.s32.totalorder %s75, 0
    %s78 = sadd.s32 %s77, 1
    %s79 = scalar_select %p76, %s77, %s78
    %p82 = pneg %p76
    %p83 = scmp.eq.s32.totalorder %s15, 1
    %p84 = por %p82, %p83
    %p85 = scmp.ne.s32.totalorder %s77, %s80
    %p86 = scmp.eq.s32.totalorder %s15, 0
    %p87 = por %p85, %p86
    %p88 = scmp.ne.s32.totalorder %s77, %s80
    %p89 = scmp.eq.s32.totalorder %s20, 1
    %p90 = por %p88, %p89
    %p91 = scmp.ne.s32.totalorder %s80, %s81
    %p92 = scmp.eq.s32.totalorder %s20, 0
    %p93 = por %p91, %p92
    %p94 = scmp.ne.s32.totalorder %s80, %s81
    %p95 = scmp.eq.s32.totalorder %s21, 1
    %p96 = por %p94, %p95
    %p98 = scmp.ne.s32.totalorder %s81, %s97
    %p99 = scmp.eq.s32.totalorder %s21, 0
    %p100 = por %p98, %p99
    %s102 = sadd.s32 %s101, 1
    %p105 = scmp.eq.s32.totalorder %s15, 1
    %p106 = scmp.ne.s32.totalorder %s101, %s103
    %p107 = scmp.eq.s32.totalorder %s15, 0
    %p108 = por %p106, %p107
    %p109 = scmp.ne.s32.totalorder %s101, %s103
    %p110 = scmp.eq.s32.totalorder %s20, 1
    %p111 = por %p109, %p110
    %p112 = scmp.ne.s32.totalorder %s103, %s104
    %p113 = scmp.eq.s32.totalorder %s20, 0
    %p114 = por %p112, %p113
    %p115 = scmp.ne.s32.totalorder %s103, %s104
    %p116 = scmp.eq.s32.totalorder %s21, 1
    %p117 = por %p115, %p116
    %p119 = scmp.ne.s32.totalorder %s104, %s118
    %p120 = scmp.eq.s32.totalorder %s21, 0
    %p121 = por %p119, %p120
    %s123 = sadd.s32 %s122, 1
    %p126 = scmp.eq.s32.totalorder %s15, 1
    %p127 = scmp.ne.s32.totalorder %s122, %s124
    %p128 = scmp.eq.s32.totalorder %s15, 0
    %p129 = por %p127, %p128
    %p130 = scmp.ne.s32.totalorder %s122, %s124
    %p131 = scmp.eq.s32.totalorder %s20, 1
    %p132 = por %p130, %p131
    %p133 = scmp.ne.s32.totalorder %s124, %s125
    %p134 = scmp.eq.s32.totalorder %s20, 0
    %p135 = por %p133, %p134
    %p136 = scmp.ne.s32.totalorder %s124, %s125
    %p137 = scmp.eq.s32.totalorder %s21, 1
    %p138 = por %p136, %p137
    %p140 = scmp.ne.s32.totalorder %s125, %s139
    %p141 = scmp.eq.s32.totalorder %s21, 0
    %p142 = por %p140, %p141
    %s144 = sadd.s32 %s143, 1
    %p147 = scmp.eq.s32.totalorder %s15, 1
    %p148 = scmp.ne.s32.totalorder %s143, %s145
    %p149 = scmp.eq.s32.totalorder %s15, 0
    %p150 = por %p148, %p149
    %p151 = scmp.ne.s32.totalorder %s143, %s145
    %p152 = scmp.eq.s32.totalorder %s20, 1
    %p153 = por %p151, %p152
    %p154 = scmp.ne.s32.totalorder %s145, %s146
    %p155 = scmp.eq.s32.totalorder %s20, 0
    %p156 = por %p154, %p155
    %p157 = scmp.ne.s32.totalorder %s145, %s146
    %p158 = scmp.eq.s32.totalorder %s21, 1
    %p159 = por %p157, %p158
    %p161 = scmp.ne.s32.totalorder %s146, %s160
    %p162 = scmp.eq.s32.totalorder %s21, 0
    %p163 = por %p161, %p162
    %s165 = sadd.s32 %s164, 1
    %p168 = scmp.eq.s32.totalorder %s15, 1
    %p169 = scmp.ne.s32.totalorder %s164, %s166
    %p170 = scmp.eq.s32.totalorder %s15, 0
    %p171 = por %p169, %p170
    %p172 = scmp.ne.s32.totalorder %s164, %s166
    %p173 = scmp.eq.s32.totalorder %s20, 1
    %p174 = por %p172, %p173
    %p175 = scmp.ne.s32.totalorder %s166, %s167
    %p176 = scmp.eq.s32.totalorder %s20, 0
    %p177 = por %p175, %p176
    %p178 = scmp.ne.s32.totalorder %s166, %s167
    %p179 = scmp.eq.s32.totalorder %s21, 1
    %p180 = por %p178, %p179
    %p182 = scmp.ne.s32.totalorder %s167, %s181
    %p183 = scmp.eq.s32.totalorder %s21, 0
    %p184 = por %p182, %p183
    %s186 = sadd.s32 %s185, 1
    %p189 = scmp.eq.s32.totalorder %s15, 1
    %p190 = scmp.ne.s32.totalorder %s185, %s187
    %p191 = scmp.eq.s32.totalorder %s15, 0
    %p192 = por %p190, %p191
    %p193 = scmp.ne.s32.totalorder %s185, %s187
    %p194 = scmp.eq.s32.totalorder %s20, 1
    %p195 = por %p193, %p194
    %p196 = scmp.ne.s32.totalorder %s187, %s188
    %p197 = scmp.eq.s32.totalorder %s20, 0
    %p198 = por %p196, %p197
    %p199 = scmp.ne.s32.totalorder %s187, %s188
    %p200 = scmp.eq.s32.totalorder %s21, 1
    %p201 = por %p199, %p200
    %p203 = scmp.ne.s32.totalorder %s188, %s202
    %p204 = scmp.eq.s32.totalorder %s21, 0
    %p205 = por %p203, %p204
    %s207 = sadd.s32 %s206, 1
    %p210 = scmp.eq.s32.totalorder %s15, 1
    %p211 = scmp.ne.s32.totalorder %s206, %s208
    %p212 = scmp.eq.s32.totalorder %s15, 0
    %p213 = por %p211, %p212
    %p214 = scmp.ne.s32.totalorder %s206, %s208
    %p215 = scmp.eq.s32.totalorder %s20, 1
    %p216 = por %p214, %p215
    %p217 = scmp.ne.s32.totalorder %s208, %s209
    %p218 = scmp.eq.s32.totalorder %s20, 0
    %p219 = por %p217, %p218
    %p220 = scmp.ne.s32.totalorder %s208, %s209
    %p221 = scmp.eq.s32.totalorder %s21, 1
    %p222 = por %p220, %p221
    %p224 = scmp.ne.s32.totalorder %s209, %s223
    %p225 = scmp.eq.s32.totalorder %s21, 0
    %p226 = por %p224, %p225
    %s227 = ssub.s32 %s15, %s22
    %p228 = scmp.eq.s32.totalorder %s227, 0
    %s230 = sadd.s32 %s229, 1
    %s231 = scalar_select %p228, %s229, %s230
    %p234 = pneg %p228
    %p235 = scmp.eq.s32.totalorder %s15, 1
    %p236 = por %p234, %p235
    %p237 = scmp.ne.s32.totalorder %s229, %s232
    %p238 = scmp.eq.s32.totalorder %s15, 0
    %p239 = por %p237, %p238
    %p240 = scmp.ne.s32.totalorder %s229, %s232
    %p241 = scmp.eq.s32.totalorder %s20, 1
    %p242 = por %p240, %p241
    %p243 = scmp.ne.s32.totalorder %s232, %s233
    %p244 = scmp.eq.s32.totalorder %s20, 0
    %p245 = por %p243, %p244
    %p246 = scmp.ne.s32.totalorder %s232, %s233
    %p247 = scmp.eq.s32.totalorder %s21, 1
    %p248 = por %p246, %p247
    %p250 = scmp.ne.s32.totalorder %s233, %s249
    %p251 = scmp.eq.s32.totalorder %s21, 0
    %p252 = por %p250, %p251
    %p253 = scmp.le.s32.totalorder 1, %s15
    %p254 = scmp.lt.s32.totalorder %s15, 3
    %p255 = pnand %p253, %p254
    %p256 = pneg %p255
    // Predicated region
    $region9: #{tpu_custom_call.1} parent=5 // pred_check
      _
    $region10: #{tpu_custom_call.1} parent=5 // pred_check_branch
      %258 = sbr.rel (%p255) target = $region12
    $region11: #{tpu_custom_call.1} parent=5 // pred_region
      %s259 = ssub.s32 %s15, 1
      // Predicated region
      $region13: #{tpu_custom_call.1} parent=11 // pred_check
        %p260 = pneg %p114
      $region14: #{tpu_custom_call.1} parent=11 // pred_check_branch
        %262 = sbr.rel (%p260) target = $region16
      $region15: #{tpu_custom_call.1} parent=11 // pred_region
        _
      $region16: #{tpu_custom_call.1} parent=11 // pred_fallthru
        _
      // Predicated region
      $region17: #{tpu_custom_call.1} parent=11 // pred_check
        %p263 = pneg %p135
      $region18: #{tpu_custom_call.1} parent=11 // pred_check_branch
        %265 = sbr.rel (%p263) target = $region20
      $region19: #{tpu_custom_call.1} parent=11 // pred_region
        _
      $region20: #{tpu_custom_call.1} parent=11 // pred_fallthru
        _
      // Predicated region
      $region21: #{tpu_custom_call.1} parent=11 // pred_check
        %p266 = pneg %p156
      $region22: #{tpu_custom_call.1} parent=11 // pred_check_branch
        %268 = sbr.rel (%p266) target = $region24
      $region23: #{tpu_custom_call.1} parent=11 // pred_region
        _
      $region24: #{tpu_custom_call.1} parent=11 // pred_fallthru
        _
      // Predicated region
      $region25: #{tpu_custom_call.1} parent=11 // pred_check
        %p269 = pneg %p177
      $region26: #{tpu_custom_call.1} parent=11 // pred_check_branch
        %271 = sbr.rel (%p269) target = $region28
      $region27: #{tpu_custom_call.1} parent=11 // pred_region
        _
      $region28: #{tpu_custom_call.1} parent=11 // pred_fallthru
        _
      // Predicated region
      $region29: #{tpu_custom_call.1} parent=11 // pred_check
        %p272 = pneg %p198
      $region30: #{tpu_custom_call.1} parent=11 // pred_check_branch
        %274 = sbr.rel (%p272) target = $region32
      $region31: #{tpu_custom_call.1} parent=11 // pred_region
        _
      $region32: #{tpu_custom_call.1} parent=11 // pred_fallthru
        _
      // Predicated region
      $region33: #{tpu_custom_call.1} parent=11 // pred_check
        %p275 = pneg %p219
      $region34: #{tpu_custom_call.1} parent=11 // pred_check_branch
        %277 = sbr.rel (%p275) target = $region36
      $region35: #{tpu_custom_call.1} parent=11 // pred_region
        _
      $region36: #{tpu_custom_call.1} parent=11 // pred_fallthru
        _
    $region12: #{tpu_custom_call.1} parent=5 // pred_fallthru
      _
    %p278 = scmp.lt.s32.totalorder %s15, 2
    // Predicated region
    $region37: #{tpu_custom_call.1} parent=5 // pred_check
      %p279 = pneg %p278
    $region38: #{tpu_custom_call.1} parent=5 // pred_check_branch
      %281 = sbr.rel (%p279) target = $region40
    $region39: #{tpu_custom_call.1} parent=5 // pred_region
      // Predicated region
      $region41: #{tpu_custom_call.1} parent=39 // pred_check
        %p282 = pneg %p35
      $region42: #{tpu_custom_call.1} parent=39 // pred_check_branch
        %284 = sbr.rel (%p282) target = $region44
      $region43: #{tpu_custom_call.1} parent=39 // pred_region
        %s285 = smul.u32 16, %s15
        %p286 = scmp.lt.s32.totalorder %s285, 31
        %s287 = scalar_select %p286, %s285, 31
        %s288 = smul.addr %s287, 8
        %s289 = scalar_lea.vmem %s0, %s288
        %s290 = smul.u32 16, %s15
      $region44: #{tpu_custom_call.1} parent=39 // pred_fallthru
        _
      // Predicated region
      $region45: #{tpu_custom_call.1} parent=39 // pred_check
        %p291 = pneg %p61
      $region46: #{tpu_custom_call.1} parent=39 // pred_check_branch
        %293 = sbr.rel (%p291) target = $region48
      $region47: #{tpu_custom_call.1} parent=39 // pred_region
        %s294 = smul.u32 16, %s15
        %p295 = scmp.lt.s32.totalorder %s294, 31
        %s296 = scalar_select %p295, %s294, 31
        %s297 = smul.addr %s296, 8
        %s298 = scalar_lea.vmem %s1, %s297
        %s299 = smul.u32 16, %s15
      $region48: #{tpu_custom_call.1} parent=39 // pred_fallthru
        _
      // Predicated region
      $region49: #{tpu_custom_call.1} parent=39 // pred_check
        %p300 = pneg %p87
      $region50: #{tpu_custom_call.1} parent=39 // pred_check_branch
        %302 = sbr.rel (%p300) target = $region52
      $region51: #{tpu_custom_call.1} parent=39 // pred_region
        %s303 = smul.u32 16, %s15
        %p304 = scmp.lt.s32.totalorder %s303, 31
        %s305 = scalar_select %p304, %s303, 31
        %s306 = smul.addr %s305, 8
        %s307 = scalar_lea.vmem %s2, %s306
        %s308 = smul.u32 16, %s15
      $region52: #{tpu_custom_call.1} parent=39 // pred_fallthru
        _
    $region40: #{tpu_custom_call.1} parent=5 // pred_fallthru
      _
    %p309 = scmp.le.s32.totalorder 1, %s15
    %p310 = scmp.lt.s32.totalorder %s15, 3
    %p311 = pnand %p309, %p310
    %p312 = pneg %p311
    // Predicated region
    $region53: #{tpu_custom_call.1} parent=5 // pred_check
      _
    $region54: #{tpu_custom_call.1} parent=5 // pred_check_branch
      %314 = sbr.rel (%p311) target = $region56
    $region55: #{tpu_custom_call.1} parent=5 // pred_region
      %s315 = ssub.s32 %s15, 1
      %s316 = smul.u32 16, %s20
      %p317 = scmp.lt.s32.totalorder %s316, 31
      %s318 = scalar_select %p317, %s316, 31
      %s319 = smul.addr %s318, 8
      %s320 = scalar_lea.vmem %s0, %s319
      %p321 = pneg %p41
      %p322 = pneg %p38
      %s323 = smul.u32 16, %s20
      %p324 = scmp.lt.s32.totalorder %s323, 31
      %s325 = scalar_select %p324, %s323, 31
      %s326 = smul.addr %s325, 8
      %s327 = scalar_lea.vmem %s1, %s326
      %p328 = pneg %p67
      %p329 = pneg %p64
      %s330 = smul.u32 16, %s20
      %p331 = scmp.lt.s32.totalorder %s330, 31
      %s332 = scalar_select %p331, %s330, 31
      %s333 = smul.addr %s332, 8
      %s334 = scalar_lea.vmem %s2, %s333
      %p335 = pneg %p93
      %p336 = pneg %p90
      %p337 = pneg %p114
      %p338 = pneg %p111
      %p339 = pneg %p135
      %p340 = pneg %p132
      %p341 = pneg %p156
      %p342 = pneg %p153
      %p343 = pneg %p177
      %p344 = pneg %p174
      %p345 = pneg %p198
      %p346 = pneg %p195
      %p347 = pneg %p219
      %p348 = pneg %p216
      %p349 = pneg %p245
      %p350 = pneg %p242
      %s351 = smul.u32 16, %s20
      %p352 = scmp.lt.s32.totalorder %s351, 31
      %s353 = scalar_select %p352, %s351, 31
      %s354 = smul.addr %s353, 8
      %s355 = scalar_lea.vmem %s9, %s354
      %s356 = smul.u32 16, %s20
      %p357 = scmp.lt.s32.totalorder %s356, 31
      %s358 = scalar_select %p357, %s356, 31
      %s359 = smul.addr %s358, 8
      %s360 = scalar_lea.vmem %s0, %s359
      %s361 = smul.u32 16, %s20
      %s362 = smul.u32 16, %s20
      %p363 = scmp.lt.s32.totalorder %s362, 31
      %s364 = scalar_select %p363, %s362, 31
      %s365 = smul.addr %s364, 8
      %s366 = scalar_lea.vmem %s1, %s365
      %s367 = smul.u32 16, %s20
      %s368 = smul.u32 16, %s20
      %p369 = scmp.lt.s32.totalorder %s368, 31
      %s370 = scalar_select %p369, %s368, 31
      %s371 = smul.addr %s370, 8
      %s372 = scalar_lea.vmem %s2, %s371
      %s373 = smul.u32 16, %s20
      %s374 = smul.u32 16, %s20
      %p375 = scmp.lt.s32.totalorder %s374, 31
      %s376 = scalar_select %p375, %s374, 31
      %s377 = smul.addr %s376, 8
      %s378 = scalar_lea.vmem %s9, %s377
      %s379 = smul.u32 16, %s20
      %v381 = vld [vmem:[%s360] sm:$0xff]
      %v382 = vld [vmem:[%s360 + $0x8] sm:$0xff]
      %v383 = vld [vmem:[%s360 + $0x10] sm:$0xff]
      %v384 = vld [vmem:[%s360 + $0x18] sm:$0xff]
      %v385 = vld [vmem:[%s360 + $0x20] sm:$0xff]
      %v386 = vld [vmem:[%s360 + $0x28] sm:$0xff]
      %v387 = vld [vmem:[%s360 + $0x30] sm:$0xff]
      %v388 = vld [vmem:[%s360 + $0x38] sm:$0xff]
      %v389 = vld [vmem:[%s360 + $0x40] sm:$0xff]
      %v390 = vld [vmem:[%s360 + $0x48] sm:$0xff]
      %v391 = vld [vmem:[%s360 + $0x50] sm:$0xff]
      %v392 = vld [vmem:[%s360 + $0x58] sm:$0xff]
      %v393 = vld [vmem:[%s360 + $0x60] sm:$0xff]
      %v394 = vld [vmem:[%s360 + $0x68] sm:$0xff]
      %v395 = vld [vmem:[%s360 + $0x70] sm:$0xff]
      %v396 = vld [vmem:[%s360 + $0x78] sm:$0xff]
      %v397 = vpack.c.bf16 %v382, %v381
      %v398 = vpack.c.bf16 %v384, %v383
      %v399 = vpack.c.bf16 %v386, %v385
      %v400 = vpack.c.bf16 %v388, %v387
      %v401 = vpack.c.bf16 %v390, %v389
      %v402 = vpack.c.bf16 %v392, %v391
      %v403 = vpack.c.bf16 %v394, %v393
      %v404 = vpack.c.bf16 %v396, %v395
      %v405 = vld [vmem:[%s366] sm:$0xff]
      %v406 = vld [vmem:[%s366 + $0x8] sm:$0xff]
      %v407 = vld [vmem:[%s366 + $0x10] sm:$0xff]
      %v408 = vld [vmem:[%s366 + $0x18] sm:$0xff]
      %v409 = vld [vmem:[%s366 + $0x20] sm:$0xff]
      %v410 = vld [vmem:[%s366 + $0x28] sm:$0xff]
      %v411 = vld [vmem:[%s366 + $0x30] sm:$0xff]
      %v412 = vld [vmem:[%s366 + $0x38] sm:$0xff]
      %v413 = vld [vmem:[%s366 + $0x40] sm:$0xff]
      %v414 = vld [vmem:[%s366 + $0x48] sm:$0xff]
      %v415 = vld [vmem:[%s366 + $0x50] sm:$0xff]
      %v416 = vld [vmem:[%s366 + $0x58] sm:$0xff]
      %v417 = vld [vmem:[%s366 + $0x60] sm:$0xff]
      %v418 = vld [vmem:[%s366 + $0x68] sm:$0xff]
      %v419 = vld [vmem:[%s366 + $0x70] sm:$0xff]
      %v420 = vld [vmem:[%s366 + $0x78] sm:$0xff]
      %v421 = vpack.c.bf16 %v406, %v405
      %v422 = vpack.c.bf16 %v408, %v407
      %v423 = vpack.c.bf16 %v410, %v409
      %v424 = vpack.c.bf16 %v412, %v411
      %v425 = vpack.c.bf16 %v414, %v413
      %v426 = vpack.c.bf16 %v416, %v415
      %v427 = vpack.c.bf16 %v418, %v417
      %v428 = vpack.c.bf16 %v420, %v419
      %v429 = vld [vmem:[%s3] sm:$0xf]
      %v430 = vld [vmem:[%s3 + $0x4] sm:$0xf]
      %v431 = vld [vmem:[%s3 + $0x8] sm:$0xf]
      %v432 = vld [vmem:[%s3 + $0xc] sm:$0xf]
      %v433 = vld [vmem:[%s4] sm:$0xf]
      %v434 = vld [vmem:[%s4 + $0x4] sm:$0xf]
      %v437 = vunpack.c.l.b16 %v433
      %v438 = vunpack.c.l.b16 %v434
      %v439 = vpack.c.b16 %v438, %v437
      %vm441 = vcmask 130048
      %v443 = vsel %vm441, %v421, 0
      %v446 = vsel %vm441, %v422, 0
      %v449 = vsel %vm441, %v423, 0
      %v452 = vsel %vm441, %v424, 0
      %v455 = vsel %vm441, %v425, 0
      %v458 = vsel %vm441, %v426, 0
      %v461 = vsel %vm441, %v427, 0
      %v464 = vsel %vm441, %v428, 0
      %466 = vmatprep.subr.bf16.mxu0 0
      %467 = vmatpush1.bf16.msra.mxu0 %v439
      %468 = vmatprep.subr.bf16.mxu0 0
      %469 = vmatpush1.bf16.msra.mxu0 0
      %470 = vmatprep.subr.bf16.mxu0 0
      %471 = vmatpush1.bf16.msra.mxu0 0
      %472 = vmatprep.subr.bf16.mxu0 0
      %473 = vmatpush1.bf16.msra.mxu0 0
      %474 = vmatprep.subr.bf16.mxu0 0
      %475 = vmatpush1.bf16.msra.mxu0 0
      %476 = vmatprep.subr.bf16.mxu0 0
      %477 = vmatpush1.bf16.msra.mxu0 0
      %478 = vmatprep.subr.bf16.mxu0 0
      %479 = vmatpush1.bf16.msra.mxu0 0
      %480 = vmatprep.subr.bf16.mxu0 0
      %481 = vmatpush1.bf16.msra.mxu0 0
      %482 = vmatprep.subr.bf16.mxu0 0
      %483 = vmatpush1.bf16.msra.mxu0 0
      %484 = vmatprep.subr.bf16.mxu0 0
      %485 = vmatpush1.bf16.msra.mxu0 0
      %486 = vmatprep.subr.bf16.mxu0 0
      %487 = vmatpush1.bf16.msra.mxu0 0
      %488 = vmatprep.subr.bf16.mxu0 0
      %489 = vmatpush1.bf16.msra.mxu0 0
      %490 = vmatprep.subr.bf16.mxu0 0
      %491 = vmatpush1.bf16.msra.mxu0 0
      %492 = vmatprep.subr.bf16.mxu0 0
      %493 = vmatpush1.bf16.msra.mxu0 0
      %494 = vmatprep.subr.bf16.mxu0 0
      %495 = vmatpush1.bf16.msra.mxu0 0
      %496 = vmatprep.subr.bf16.mxu0 0
      %497 = vmatpush1.bf16.msra.mxu0 0
      %498 = vmatprep.mubr.bf16.mxu0 0
      %499 = vmatmul.mubr.bf16.gmra.mrb[0].mxu0 %v443
      %v500 = vpop.f32.mrb[0].mxu0
      %v501 = vadd.f32 0.0, %v500
      %v502 = vpop.f32.mrb[0].mxu0
      %v503 = vpop.f32.mrb[0].mxu0
      %v504 = vadd.f32 0.0, %v503
      %v505 = vpop.f32.mrb[0].mxu0
      %506 = vmatprep.mubr.bf16.mxu0 0
      %507 = vmatmul.mubr.bf16.gmra.mrb[0].mxu0 %v446
      %v508 = vpop.f32.mrb[0].mxu0
      %v509 = vadd.f32 0.0, %v508
      %v510 = vpop.f32.mrb[0].mxu0
      %v511 = vpop.f32.mrb[0].mxu0
      %v512 = vadd.f32 0.0, %v511
      %v513 = vpop.f32.mrb[0].mxu0
      %514 = vmatprep.mubr.bf16.mxu0 0
      %515 = vmatmul.mubr.bf16.gmra.mrb[0].mxu0 %v449
      %v516 = vpop.f32.mrb[0].mxu0
      %v517 = vadd.f32 0.0, %v516
      %v518 = vpop.f32.mrb[0].mxu0
      %v519 = vpop.f32.mrb[0].mxu0
      %v520 = vadd.f32 0.0, %v519
      %v521 = vpop.f32.mrb[0].mxu0
      %522 = vmatprep.mubr.bf16.mxu0 0
      %523 = vmatmul.mubr.bf16.gmra.mrb[0].mxu0 %v452
      %v524 = vpop.f32.mrb[0].mxu0
      %v525 = vadd.f32 0.0, %v524
      %v526 = vpop.f32.mrb[0].mxu0
      %v527 = vpop.f32.mrb[0].mxu0
      %v528 = vadd.f32 0.0, %v527
      %v529 = vpop.f32.mrb[0].mxu0
      %530 = vmatprep.mubr.bf16.mxu0 0
      %531 = vmatmul.mubr.bf16.gmra.mrb[0].mxu0 %v455
      %v532 = vpop.f32.mrb[0].mxu0
      %v533 = vadd.f32 0.0, %v532
      %v534 = vpop.f32.mrb[0].mxu0
      %v535 = vpop.f32.mrb[0].mxu0
      %v536 = vadd.f32 0.0, %v535
      %v537 = vpop.f32.mrb[0].mxu0
      %538 = vmatprep.mubr.bf16.mxu0 0
      %539 = vmatmul.mubr.bf16.gmra.mrb[0].mxu0 %v458
      %v540 = vpop.f32.mrb[0].mxu0
      %v541 = vadd.f32 0.0, %v540
      %v542 = vpop.f32.mrb[0].mxu0
      %v543 = vpop.f32.mrb[0].mxu0
      %v544 = vadd.f32 0.0, %v543
      %v545 = vpop.f32.mrb[0].mxu0
      %546 = vmatprep.mubr.bf16.mxu0 0
      %547 = vmatmul.mubr.bf16.gmra.mrb[0].mxu0 %v461
      %v548 = vpop.f32.mrb[0].mxu0
      %v549 = vadd.f32 0.0, %v548
      %v550 = vpop.f32.mrb[0].mxu0
      %v551 = vpop.f32.mrb[0].mxu0
      %v552 = vadd.f32 0.0, %v551
      %v553 = vpop.f32.mrb[0].mxu0
      %554 = vmatprep.mubr.bf16.mxu0 0
      %555 = vmatmul.mubr.bf16.gmra.mrb[0].mxu0 %v464
      %v556 = vpop.f32.mrb[0].mxu0
      %v557 = vadd.f32 0.0, %v556
      %v558 = vpop.f32.mrb[0].mxu0
      %v559 = vpop.f32.mrb[0].mxu0
      %v560 = vadd.f32 0.0, %v559
      %v561 = vpop.f32.mrb[0].mxu0
      %562 = vdwg.mxu0
      %v567 = vunpack.c.l.b16 %v429
      %v568 = vunpack.c.l.b16 %v430
      %v569 = vunpack.c.l.b16 %v431
      %v570 = vunpack.c.l.b16 %v432
      %v571 = vpack.c.b16 %v568, %v567
      %v572 = vpack.c.b16 %v570, %v569
      %vm575 = vcmask 261120
      %v577 = vsel %vm575, %v397, 0
      %v580 = vsel %vm575, %v398, 0
      %v583 = vsel %vm575, %v399, 0
      %v586 = vsel %vm575, %v400, 0
      %v589 = vsel %vm575, %v401, 0
      %v592 = vsel %vm575, %v402, 0
      %v595 = vsel %vm575, %v403, 0
      %v598 = vsel %vm575, %v404, 0
      %600 = vmatprep.subr.bf16.mxu0 0
      %601 = vmatpush1.bf16.msra.mxu0 %v571
      %602 = vmatprep.subr.bf16.mxu0 0
      %603 = vmatpush1.bf16.msra.mxu0 %v572
      %604 = vmatprep.subr.bf16.mxu0 0
      %605 = vmatpush1.bf16.msra.mxu0 0
      %606 = vmatprep.subr.bf16.mxu0 0
      %607 = vmatpush1.bf16.msra.mxu0 0
      %608 = vmatprep.subr.bf16.mxu0 0
      %609 = vmatpush1.bf16.msra.mxu0 0
      %610 = vmatprep.subr.bf16.mxu0 0
      %611 = vmatpush1.bf16.msra.mxu0 0
      %612 = vmatprep.subr.bf16.mxu0 0
      %613 = vmatpush1.bf16.msra.mxu0 0
      %614 = vmatprep.subr.bf16.mxu0 0
      %615 = vmatpush1.bf16.msra.mxu0 0
      %616 = vmatprep.subr.bf16.mxu0 0
      %617 = vmatpush1.bf16.msra.mxu0 0
      %618 = vmatprep.subr.bf16.mxu0 0
      %619 = vmatpush1.bf16.msra.mxu0 0
      %620 = vmatprep.subr.bf16.mxu0 0
      %621 = vmatpush1.bf16.msra.mxu0 0
      %622 = vmatprep.subr.bf16.mxu0 0
      %623 = vmatpush1.bf16.msra.mxu0 0
      %624 = vmatprep.subr.bf16.mxu0 0
      %625 = vmatpush1.bf16.msra.mxu0 0
      %626 = vmatprep.subr.bf16.mxu0 0
      %627 = vmatpush1.bf16.msra.mxu0 0
      %628 = vmatprep.subr.bf16.mxu0 0
      %629 = vmatpush1.bf16.msra.mxu0 0
      %630 = vmatprep.subr.bf16.mxu0 0
      %631 = vmatpush1.bf16.msra.mxu0 0
      %632 = vmatprep.mubr.bf16.mxu0 0
      %633 = vmatmul.mubr.bf16.gmra.mrb[0].mxu0 %v577
      %v634 = vpop.f32.mrb[0].mxu0
      %v635 = vadd.f32 %v501, %v634
      %v636 = vpop.f32.mrb[0].mxu0
      %v637 = vpop.f32.mrb[0].mxu0
      %v638 = vadd.f32 %v504, %v637
      %v639 = vpop.f32.mrb[0].mxu0
      %640 = vmatprep.mubr.bf16.mxu0 0
      %641 = vmatmul.mubr.bf16.gmra.mrb[0].mxu0 %v580
      %v642 = vpop.f32.mrb[0].mxu0
      %v643 = vadd.f32 %v509, %v642
      %v644 = vpop.f32.mrb[0].mxu0
      %v645 = vpop.f32.mrb[0].mxu0
      %v646 = vadd.f32 %v512, %v645
      %v647 = vpop.f32.mrb[0].mxu0
      %648 = vmatprep.mubr.bf16.mxu0 0
      %649 = vmatmul.mubr.bf16.gmra.mrb[0].mxu0 %v583
      %v650 = vpop.f32.mrb[0].mxu0
      %v651 = vadd.f32 %v517, %v650
      %v652 = vpop.f32.mrb[0].mxu0
      %v653 = vpop.f32.mrb[0].mxu0
      %v654 = vadd.f32 %v520, %v653
      %v655 = vpop.f32.mrb[0].mxu0
      %656 = vmatprep.mubr.bf16.mxu0 0
      %657 = vmatmul.mubr.bf16.gmra.mrb[0].mxu0 %v586
      %v658 = vpop.f32.mrb[0].mxu0
      %v659 = vadd.f32 %v525, %v658
      %v660 = vpop.f32.mrb[0].mxu0
      %v661 = vpop.f32.mrb[0].mxu0
      %v662 = vadd.f32 %v528, %v661
      %v663 = vpop.f32.mrb[0].mxu0
      %664 = vmatprep.mubr.bf16.mxu0 0
      %665 = vmatmul.mubr.bf16.gmra.mrb[0].mxu0 %v589
      %v666 = vpop.f32.mrb[0].mxu0
      %v667 = vadd.f32 %v533, %v666
      %v668 = vpop.f32.mrb[0].mxu0
      %v669 = vpop.f32.mrb[0].mxu0
      %v670 = vadd.f32 %v536, %v669
      %v671 = vpop.f32.mrb[0].mxu0
      %672 = vmatprep.mubr.bf16.mxu0 0
      %673 = vmatmul.mubr.bf16.gmra.mrb[0].mxu0 %v592
      %v674 = vpop.f32.mrb[0].mxu0
      %v675 = vadd.f32 %v541, %v674
      %v676 = vpop.f32.mrb[0].mxu0
      %v677 = vpop.f32.mrb[0].mxu0
      %v678 = vadd.f32 %v544, %v677
      %v679 = vpop.f32.mrb[0].mxu0
      %680 = vmatprep.mubr.bf16.mxu0 0
      %681 = vmatmul.mubr.bf16.gmra.mrb[0].mxu0 %v595
      %v682 = vpop.f32.mrb[0].mxu0
      %v683 = vadd.f32 %v549, %v682
      %v684 = vpop.f32.mrb[0].mxu0
      %v685 = vpop.f32.mrb[0].mxu0
      %v686 = vadd.f32 %v552, %v685
      %v687 = vpop.f32.mrb[0].mxu0
      %688 = vmatprep.mubr.bf16.mxu0 0
      %689 = vmatmul.mubr.bf16.gmra.mrb[0].mxu0 %v598
      %v690 = vpop.f32.mrb[0].mxu0
      %v691 = vadd.f32 %v557, %v690
      %v692 = vpop.f32.mrb[0].mxu0
      %v693 = vpop.f32.mrb[0].mxu0
      %v694 = vadd.f32 %v560, %v693
      %v695 = vpop.f32.mrb[0].mxu0
      %696 = vdwg.mxu0
      %v697 = vld [vmem:[%s7] sm:$0x1]
      %v698 = vld [vmem:[%s7 + $0x1] sm:$0x1]
      %vm699 = vcmask 523264
      %v700 = vsel %vm699, %v635, 0.0
      %701 = vadd.xlane.f32.xlu0 %v700
      %v702 = vpop.xlane.xlu0 %701
      %v703 = vsel %vm699, %v638, 0.0
      %704 = vadd.xlane.f32.xlu0 %v703
      %v705 = vpop.xlane.xlu0 %704
      %v706 = vsel %vm699, %v643, 0.0
      %707 = vadd.xlane.f32.xlu0 %v706
      %v708 = vpop.xlane.xlu0 %707
      %v709 = vsel %vm699, %v646, 0.0
      %710 = vadd.xlane.f32.xlu0 %v709
      %v711 = vpop.xlane.xlu0 %710
      %v712 = vsel %vm699, %v651, 0.0
      %713 = vadd.xlane.f32.xlu0 %v712
      %v714 = vpop.xlane.xlu0 %713
      %v715 = vsel %vm699, %v654, 0.0
      %716 = vadd.xlane.f32.xlu0 %v715
      %v717 = vpop.xlane.xlu0 %716
      %v718 = vsel %vm699, %v659, 0.0
      %719 = vadd.xlane.f32.xlu0 %v718
      %v720 = vpop.xlane.xlu0 %719
      %v721 = vsel %vm699, %v662, 0.0
      %722 = vadd.xlane.f32.xlu0 %v721
      %v723 = vpop.xlane.xlu0 %722
      %v724 = vsel %vm699, %v667, 0.0
      %725 = vadd.xlane.f32.xlu0 %v724
      %v726 = vpop.xlane.xlu0 %725
      %v727 = vsel %vm699, %v670, 0.0
      %728 = vadd.xlane.f32.xlu0 %v727
      %v729 = vpop.xlane.xlu0 %728
      %v730 = vsel %vm699, %v675, 0.0
      %731 = vadd.xlane.f32.xlu0 %v730
      %v732 = vpop.xlane.xlu0 %731
      %v733 = vsel %vm699, %v678, 0.0
      %734 = vadd.xlane.f32.xlu0 %v733
      %v735 = vpop.xlane.xlu0 %734
      %v736 = vsel %vm699, %v683, 0.0
      %737 = vadd.xlane.f32.xlu0 %v736
      %v738 = vpop.xlane.xlu0 %737
      %v739 = vsel %vm699, %v686, 0.0
      %740 = vadd.xlane.f32.xlu0 %v739
      %v741 = vpop.xlane.xlu0 %740
      %v742 = vsel %vm699, %v691, 0.0
      %743 = vadd.xlane.f32.xlu0 %v742
      %v744 = vpop.xlane.xlu0 %743
      %v745 = vsel %vm699, %v694, 0.0
      %746 = vadd.xlane.f32.xlu0 %v745
      %v747 = vpop.xlane.xlu0 %746
      %v748 = vrcp.pop 64.0
      %v749 = vmul.f32 %v702, %v748
      %v750 = vmul.f32 %v705, %v748
      %v751 = vmul.f32 %v708, %v748
      %v752 = vmul.f32 %v711, %v748
      %v753 = vmul.f32 %v714, %v748
      %v754 = vmul.f32 %v717, %v748
      %v755 = vmul.f32 %v720, %v748
      %v756 = vmul.f32 %v723, %v748
      %v757 = vmul.f32 %v726, %v748
      %v758 = vmul.f32 %v729, %v748
      %v759 = vmul.f32 %v732, %v748
      %v760 = vmul.f32 %v735, %v748
      %v761 = vmul.f32 %v738, %v748
      %v762 = vmul.f32 %v741, %v748
      %v763 = vmul.f32 %v744, %v748
      %v764 = vmul.f32 %v747, %v748
      %v765 = vsub.f32 %v635, %v749
      %v766 = vsub.f32 %v638, %v750
      %v767 = vsub.f32 %v643, %v751
      %v768 = vsub.f32 %v646, %v752
      %v769 = vsub.f32 %v651, %v753
      %v770 = vsub.f32 %v654, %v754
      %v771 = vsub.f32 %v659, %v755
      %v772 = vsub.f32 %v662, %v756
      %v773 = vsub.f32 %v667, %v757
      %v774 = vsub.f32 %v670, %v758
      %v775 = vsub.f32 %v675, %v759
      %v776 = vsub.f32 %v678, %v760
      %v777 = vsub.f32 %v683, %v761
      %v778 = vsub.f32 %v686, %v762
      %v779 = vsub.f32 %v691, %v763
      %v780 = vsub.f32 %v694, %v764
      %v781 = vmul.f32 %v765, %v765
      %v782 = vmul.f32 %v766, %v766
      %v783 = vmul.f32 %v767, %v767
      %v784 = vmul.f32 %v768, %v768
      %v785 = vmul.f32 %v769, %v769
      %v786 = vmul.f32 %v770, %v770
      %v787 = vmul.f32 %v771, %v771
      %v788 = vmul.f32 %v772, %v772
      %v789 = vmul.f32 %v773, %v773
      %v790 = vmul.f32 %v774, %v774
      %v791 = vmul.f32 %v775, %v775
      %v792 = vmul.f32 %v776, %v776
      %v793 = vmul.f32 %v777, %v777
      %v794 = vmul.f32 %v778, %v778
      %v795 = vmul.f32 %v779, %v779
      %v796 = vmul.f32 %v780, %v780
      %v797 = vsel %vm699, %v781, 0.0
      %798 = vadd.xlane.f32.xlu0 %v797
      %v799 = vpop.xlane.xlu0 %798
      %v800 = vsel %vm699, %v782, 0.0
      %801 = vadd.xlane.f32.xlu0 %v800
      %v802 = vpop.xlane.xlu0 %801
      %v803 = vsel %vm699, %v783, 0.0
      %804 = vadd.xlane.f32.xlu0 %v803
      %v805 = vpop.xlane.xlu0 %804
      %v806 = vsel %vm699, %v784, 0.0
      %807 = vadd.xlane.f32.xlu0 %v806
      %v808 = vpop.xlane.xlu0 %807
      %v809 = vsel %vm699, %v785, 0.0
      %810 = vadd.xlane.f32.xlu0 %v809
      %v811 = vpop.xlane.xlu0 %810
      %v812 = vsel %vm699, %v786, 0.0
      %813 = vadd.xlane.f32.xlu0 %v812
      %v814 = vpop.xlane.xlu0 %813
      %v815 = vsel %vm699, %v787, 0.0
      %816 = vadd.xlane.f32.xlu0 %v815
      %v817 = vpop.xlane.xlu0 %816
      %v818 = vsel %vm699, %v788, 0.0
      %819 = vadd.xlane.f32.xlu0 %v818
      %v820 = vpop.xlane.xlu0 %819
      %v821 = vsel %vm699, %v789, 0.0
      %822 = vadd.xlane.f32.xlu0 %v821
      %v823 = vpop.xlane.xlu0 %822
      %v824 = vsel %vm699, %v790, 0.0
      %825 = vadd.xlane.f32.xlu0 %v824
      %v826 = vpop.xlane.xlu0 %825
      %v827 = vsel %vm699, %v791, 0.0
      %828 = vadd.xlane.f32.xlu0 %v827
      %v829 = vpop.xlane.xlu0 %828
      %v830 = vsel %vm699, %v792, 0.0
      %831 = vadd.xlane.f32.xlu0 %v830
      %v832 = vpop.xlane.xlu0 %831
      %v833 = vsel %vm699, %v793, 0.0
      %834 = vadd.xlane.f32.xlu0 %v833
      %v835 = vpop.xlane.xlu0 %834
      %v836 = vsel %vm699, %v794, 0.0
      %837 = vadd.xlane.f32.xlu0 %v836
      %v838 = vpop.xlane.xlu0 %837
      %v839 = vsel %vm699, %v795, 0.0
      %840 = vadd.xlane.f32.xlu0 %v839
      %v841 = vpop.xlane.xlu0 %840
      %v842 = vsel %vm699, %v796, 0.0
      %843 = vadd.xlane.f32.xlu0 %v842
      %v844 = vpop.xlane.xlu0 %843
      %v845 = vmul.f32 %v799, %v748
      %v846 = vmul.f32 %v802, %v748
      %v847 = vmul.f32 %v805, %v748
      %v848 = vmul.f32 %v808, %v748
      %v849 = vmul.f32 %v811, %v748
      %v850 = vmul.f32 %v814, %v748
      %v851 = vmul.f32 %v817, %v748
      %v852 = vmul.f32 %v820, %v748
      %v853 = vmul.f32 %v823, %v748
      %v854 = vmul.f32 %v826, %v748
      %v855 = vmul.f32 %v829, %v748
      %v856 = vmul.f32 %v832, %v748
      %v857 = vmul.f32 %v835, %v748
      %v858 = vmul.f32 %v838, %v748
      %v859 = vmul.f32 %v841, %v748
      %v860 = vmul.f32 %v844, %v748
      %v861 = vadd.f32 %v845, 1e-05
      %v862 = vadd.f32 %v846, 1e-05
      %v863 = vadd.f32 %v847, 1e-05
      %v864 = vadd.f32 %v848, 1e-05
      %v865 = vadd.f32 %v849, 1e-05
      %v866 = vadd.f32 %v850, 1e-05
      %v867 = vadd.f32 %v851, 1e-05
      %v868 = vadd.f32 %v852, 1e-05
      %v869 = vadd.f32 %v853, 1e-05
      %v870 = vadd.f32 %v854, 1e-05
      %v871 = vadd.f32 %v855, 1e-05
      %v872 = vadd.f32 %v856, 1e-05
      %v873 = vadd.f32 %v857, 1e-05
      %v874 = vadd.f32 %v858, 1e-05
      %v875 = vadd.f32 %v859, 1e-05
      %v876 = vadd.f32 %v860, 1e-05
      %v877 = vrsqrt.pop %v861
      %v878 = vrsqrt.pop %v862
      %v879 = vrsqrt.pop %v863
      %v880 = vrsqrt.pop %v864
      %v881 = vrsqrt.pop %v865
      %v882 = vrsqrt.pop %v866
      %v883 = vrsqrt.pop %v867
      %v884 = vrsqrt.pop %v868
      %v885 = vrsqrt.pop %v869
      %v886 = vrsqrt.pop %v870
      %v887 = vrsqrt.pop %v871
      %v888 = vrsqrt.pop %v872
      %v889 = vrsqrt.pop %v873
      %v890 = vrsqrt.pop %v874
      %v891 = vrsqrt.pop %v875
      %v892 = vrsqrt.pop %v876
      %v893 = vmul.f32 %v765, %v877
      %v894 = vmul.f32 %v766, %v878
      %v895 = vmul.f32 %v767, %v879
      %v896 = vmul.f32 %v768, %v880
      %v897 = vmul.f32 %v769, %v881
      %v898 = vmul.f32 %v770, %v882
      %v899 = vmul.f32 %v771, %v883
      %v900 = vmul.f32 %v772, %v884
      %v901 = vmul.f32 %v773, %v885
      %v902 = vmul.f32 %v774, %v886
      %v903 = vmul.f32 %v775, %v887
      %v904 = vmul.f32 %v776, %v888
      %v905 = vmul.f32 %v777, %v889
      %v906 = vmul.f32 %v778, %v890
      %v907 = vmul.f32 %v779, %v891
      %v908 = vmul.f32 %v780, %v892
      %v909 = vlaneseq
      %v910 = vshrl.u32 %v909, 7
      %v911 = vsub.s32 0, %v910
      %v912 = vrot.slane %v697, %v911
      %v913 = vmul.f32 %v893, %v912
      %v914 = vmul.f32 %v894, %v912
      %v915 = vmul.f32 %v895, %v912
      %v916 = vmul.f32 %v896, %v912
      %v917 = vmul.f32 %v897, %v912
      %v918 = vmul.f32 %v898, %v912
      %v919 = vmul.f32 %v899, %v912
      %v920 = vmul.f32 %v900, %v912
      %v921 = vmul.f32 %v901, %v912
      %v922 = vmul.f32 %v902, %v912
      %v923 = vmul.f32 %v903, %v912
      %v924 = vmul.f32 %v904, %v912
      %v925 = vmul.f32 %v905, %v912
      %v926 = vmul.f32 %v906, %v912
      %v927 = vmul.f32 %v907, %v912
      %v928 = vmul.f32 %v908, %v912
      %v929 = vlaneseq
      %v930 = vshrl.u32 %v929, 7
      %v931 = vsub.s32 0, %v930
      %v932 = vrot.slane %v698, %v931
      %v933 = vadd.f32 %v913, %v932
      %v934 = vadd.f32 %v914, %v932
      %v935 = vadd.f32 %v915, %v932
      %v936 = vadd.f32 %v916, %v932
      %v937 = vadd.f32 %v917, %v932
      %v938 = vadd.f32 %v918, %v932
      %v939 = vadd.f32 %v919, %v932
      %v940 = vadd.f32 %v920, %v932
      %v941 = vadd.f32 %v921, %v932
      %v942 = vadd.f32 %v922, %v932
      %v943 = vadd.f32 %v923, %v932
      %v944 = vadd.f32 %v924, %v932
      %v945 = vadd.f32 %v925, %v932
      %v946 = vadd.f32 %v926, %v932
      %v947 = vadd.f32 %v927, %v932
      %v948 = vadd.f32 %v928, %v932
      %v949 = vmax.f32 %v933, 0.0
      %v950 = vmax.f32 %v934, 0.0
      %v951 = vmax.f32 %v935, 0.0
      %v952 = vmax.f32 %v936, 0.0
      %v953 = vmax.f32 %v937, 0.0
      %v954 = vmax.f32 %v938, 0.0
      %v955 = vmax.f32 %v939, 0.0
      %v956 = vmax.f32 %v940, 0.0
      %v957 = vmax.f32 %v941, 0.0
      %v958 = vmax.f32 %v942, 0.0
      %v959 = vmax.f32 %v943, 0.0
      %v960 = vmax.f32 %v944, 0.0
      %v961 = vmax.f32 %v945, 0.0
      %v962 = vmax.f32 %v946, 0.0
      %v963 = vmax.f32 %v947, 0.0
      %v964 = vmax.f32 %v948, 0.0
      %v965 = vpack.c.bf16 %v950, %v949
      %v966 = vpack.c.bf16 %v952, %v951
      %v967 = vpack.c.bf16 %v954, %v953
      %v968 = vpack.c.bf16 %v956, %v955
      %v969 = vpack.c.bf16 %v958, %v957
      %v970 = vpack.c.bf16 %v960, %v959
      %v971 = vpack.c.bf16 %v962, %v961
      %v972 = vpack.c.bf16 %v964, %v963
      %v973 = vld [vmem:[%s6] sm:$0xf]
      %v974 = vld [vmem:[%s6 + $0x4] sm:$0xf]
      %v975 = vld [vmem:[%s6 + $0x8] sm:$0xf]
      %v976 = vld [vmem:[%s6 + $0xc] sm:$0xf]
      %v977 = vld [vmem:[%s6 + $0x10] sm:$0xf]
      %v978 = vld [vmem:[%s6 + $0x14] sm:$0xf]
      %v979 = vld [vmem:[%s6 + $0x18] sm:$0xf]
      %v980 = vld [vmem:[%s6 + $0x1c] sm:$0xf]
      %v981 = vld [vmem:[%s7 + $0x2] sm:$0x1]
      %v982 = vlaneseq
      %v983 = vshrl.u32 %v982, 7
      %v984 = vsub.s32 0, %v983
      %v985 = vrot.slane %v981, %v984
      %v994 = vunpack.c.l.b16 %v973
      %v995 = vunpack.c.l.b16 %v974
      %v996 = vunpack.c.l.b16 %v975
      %v997 = vunpack.c.l.b16 %v976
      %v998 = vunpack.c.l.b16 %v977
      %v999 = vunpack.c.l.b16 %v978
      %v1000 = vunpack.c.l.b16 %v979
      %v1001 = vunpack.c.l.b16 %v980
      %v1002 = vpack.c.b16 %v995, %v994
      %v1003 = vpack.c.b16 %v997, %v996
      %v1004 = vpack.c.b16 %v999, %v998
      %v1005 = vpack.c.b16 %v1001, %v1000
      %v1011 = vsel %vm699, %v965, 0
      %v1014 = vsel %vm699, %v966, 0
      %v1017 = vsel %vm699, %v967, 0
      %v1020 = vsel %vm699, %v968, 0
      %v1023 = vsel %vm699, %v969, 0
      %v1026 = vsel %vm699, %v970, 0
      %v1029 = vsel %vm699, %v971, 0
      %v1032 = vsel %vm699, %v972, 0
      %1034 = vmatprep.subr.bf16.mxu0 0
      %1035 = vmatpush1.bf16.msra.mxu0 %v1002
      %1036 = vmatprep.subr.bf16.mxu0 0
      %1037 = vmatpush1.bf16.msra.mxu0 %v1003
      %1038 = vmatprep.subr.bf16.mxu0 0
      %1039 = vmatpush1.bf16.msra.mxu0 %v1004
      %1040 = vmatprep.subr.bf16.mxu0 0
      %1041 = vmatpush1.bf16.msra.mxu0 %v1005
      %1042 = vmatprep.subr.bf16.mxu0 0
      %1043 = vmatpush1.bf16.msra.mxu0 0
      %1044 = vmatprep.subr.bf16.mxu0 0
      %1045 = vmatpush1.bf16.msra.mxu0 0
      %1046 = vmatprep.subr.bf16.mxu0 0
      %1047 = vmatpush1.bf16.msra.mxu0 0
      %1048 = vmatprep.subr.bf16.mxu0 0
      %1049 = vmatpush1.bf16.msra.mxu0 0
      %1050 = vmatprep.subr.bf16.mxu0 0
      %1051 = vmatpush1.bf16.msra.mxu0 0
      %1052 = vmatprep.subr.bf16.mxu0 0
      %1053 = vmatpush1.bf16.msra.mxu0 0
      %1054 = vmatprep.subr.bf16.mxu0 0
      %1055 = vmatpush1.bf16.msra.mxu0 0
      %1056 = vmatprep.subr.bf16.mxu0 0
      %1057 = vmatpush1.bf16.msra.mxu0 0
      %1058 = vmatprep.subr.bf16.mxu0 0
      %1059 = vmatpush1.bf16.msra.mxu0 0
      %1060 = vmatprep.subr.bf16.mxu0 0
      %1061 = vmatpush1.bf16.msra.mxu0 0
      %1062 = vmatprep.subr.bf16.mxu0 0
      %1063 = vmatpush1.bf16.msra.mxu0 0
      %1064 = vmatprep.subr.bf16.mxu0 0
      %1065 = vmatpush1.bf16.msra.mxu0 0
      %1066 = vmatprep.mubr.bf16.mxu0 0
      %1067 = vmatmul.mubr.bf16.gmra.mrb[0].mxu0 %v1011
      %v1068 = vpop.f32.mrb[0].mxu0
      %v1069 = vadd.f32 %v985, %v1068
      %v1070 = vpop.f32.mrb[0].mxu0
      %v1071 = vpop.f32.mrb[0].mxu0
      %v1072 = vadd.f32 %v985, %v1071
      %v1073 = vpop.f32.mrb[0].mxu0
      %1074 = vmatprep.mubr.bf16.mxu0 0
      %1075 = vmatmul.mubr.bf16.gmra.mrb[0].mxu0 %v1014
      %v1076 = vpop.f32.mrb[0].mxu0
      %v1077 = vadd.f32 %v985, %v1076
      %v1078 = vpop.f32.mrb[0].mxu0
      %v1079 = vpop.f32.mrb[0].mxu0
      %v1080 = vadd.f32 %v985, %v1079
      %v1081 = vpop.f32.mrb[0].mxu0
      %1082 = vmatprep.mubr.bf16.mxu0 0
      %1083 = vmatmul.mubr.bf16.gmra.mrb[0].mxu0 %v1017
      %v1084 = vpop.f32.mrb[0].mxu0
      %v1085 = vadd.f32 %v985, %v1084
      %v1086 = vpop.f32.mrb[0].mxu0
      %v1087 = vpop.f32.mrb[0].mxu0
      %v1088 = vadd.f32 %v985, %v1087
      %v1089 = vpop.f32.mrb[0].mxu0
      %1090 = vmatprep.mubr.bf16.mxu0 0
      %1091 = vmatmul.mubr.bf16.gmra.mrb[0].mxu0 %v1020
      %v1092 = vpop.f32.mrb[0].mxu0
      %v1093 = vadd.f32 %v985, %v1092
      %v1094 = vpop.f32.mrb[0].mxu0
      %v1095 = vpop.f32.mrb[0].mxu0
      %v1096 = vadd.f32 %v985, %v1095
      %v1097 = vpop.f32.mrb[0].mxu0
      %1098 = vmatprep.mubr.bf16.mxu0 0
      %1099 = vmatmul.mubr.bf16.gmra.mrb[0].mxu0 %v1023
      %v1100 = vpop.f32.mrb[0].mxu0
      %v1101 = vadd.f32 %v985, %v1100
      %v1102 = vpop.f32.mrb[0].mxu0
      %v1103 = vpop.f32.mrb[0].mxu0
      %v1104 = vadd.f32 %v985, %v1103
      %v1105 = vpop.f32.mrb[0].mxu0
      %1106 = vmatprep.mubr.bf16.mxu0 0
      %1107 = vmatmul.mubr.bf16.gmra.mrb[0].mxu0 %v1026
      %v1108 = vpop.f32.mrb[0].mxu0
      %v1109 = vadd.f32 %v985, %v1108
      %v1110 = vpop.f32.mrb[0].mxu0
      %v1111 = vpop.f32.mrb[0].mxu0
      %v1112 = vadd.f32 %v985, %v1111
      %v1113 = vpop.f32.mrb[0].mxu0
      %1114 = vmatprep.mubr.bf16.mxu0 0
      %1115 = vmatmul.mubr.bf16.gmra.mrb[0].mxu0 %v1029
      %v1116 = vpop.f32.mrb[0].mxu0
      %v1117 = vadd.f32 %v985, %v1116
      %v1118 = vpop.f32.mrb[0].mxu0
      %v1119 = vpop.f32.mrb[0].mxu0
      %v1120 = vadd.f32 %v985, %v1119
      %v1121 = vpop.f32.mrb[0].mxu0
      %1122 = vmatprep.mubr.bf16.mxu0 0
      %1123 = vmatmul.mubr.bf16.gmra.mrb[0].mxu0 %v1032
      %v1124 = vpop.f32.mrb[0].mxu0
      %v1125 = vadd.f32 %v985, %v1124
      %v1126 = vpop.f32.mrb[0].mxu0
      %v1127 = vpop.f32.mrb[0].mxu0
      %v1128 = vadd.f32 %v985, %v1127
      %v1129 = vpop.f32.mrb[0].mxu0
      %1130 = vdwg.mxu0
      %v1131 = vld [vmem:[%s5] sm:$0xf]
      %v1132 = vld [vmem:[%s5 + $0x4] sm:$0xf]
      %v1133 = vld [vmem:[%s5 + $0x8] sm:$0xf]
      %v1134 = vld [vmem:[%s5 + $0xc] sm:$0xf]
      %v1139 = vunpack.c.l.b16 %v1131
      %v1140 = vunpack.c.l.b16 %v1132
      %v1141 = vunpack.c.l.b16 %v1133
      %v1142 = vunpack.c.l.b16 %v1134
      %v1143 = vpack.c.b16 %v1140, %v1139
      %v1144 = vpack.c.b16 %v1142, %v1141
      %1147 = vmatprep.subr.bf16.mxu0 0
      %1148 = vmatpush1.bf16.msra.mxu0 %v1143
      %1149 = vmatprep.subr.bf16.mxu0 0
      %1150 = vmatpush1.bf16.msra.mxu0 %v1144
      %1151 = vmatprep.subr.bf16.mxu0 0
      %1152 = vmatpush1.bf16.msra.mxu0 0
      %1153 = vmatprep.subr.bf16.mxu0 0
      %1154 = vmatpush1.bf16.msra.mxu0 0
      %1155 = vmatprep.subr.bf16.mxu0 0
      %1156 = vmatpush1.bf16.msra.mxu0 0
      %1157 = vmatprep.subr.bf16.mxu0 0
      %1158 = vmatpush1.bf16.msra.mxu0 0
      %1159 = vmatprep.subr.bf16.mxu0 0
      %1160 = vmatpush1.bf16.msra.mxu0 0
      %1161 = vmatprep.subr.bf16.mxu0 0
      %1162 = vmatpush1.bf16.msra.mxu0 0
      %1163 = vmatprep.subr.bf16.mxu0 0
      %1164 = vmatpush1.bf16.msra.mxu0 0
      %1165 = vmatprep.subr.bf16.mxu0 0
      %1166 = vmatpush1.bf16.msra.mxu0 0
      %1167 = vmatprep.subr.bf16.mxu0 0
      %1168 = vmatpush1.bf16.msra.mxu0 0
      %1169 = vmatprep.subr.bf16.mxu0 0
      %1170 = vmatpush1.bf16.msra.mxu0 0
      %1171 = vmatprep.subr.bf16.mxu0 0
      %1172 = vmatpush1.bf16.msra.mxu0 0
      %1173 = vmatprep.subr.bf16.mxu0 0
      %1174 = vmatpush1.bf16.msra.mxu0 0
      %1175 = vmatprep.subr.bf16.mxu0 0
      %1176 = vmatpush1.bf16.msra.mxu0 0
      %1177 = vmatprep.subr.bf16.mxu0 0
      %1178 = vmatpush1.bf16.msra.mxu0 0
      %1179 = vmatprep.mubr.bf16.mxu0 0
      %1180 = vmatmul.mubr.bf16.gmra.mrb[0].mxu0 %v577
      %v1181 = vpop.f32.mrb[0].mxu0
      %v1182 = vadd.f32 0.0, %v1181
      %v1183 = vpop.f32.mrb[0].mxu0
      %v1184 = vpop.f32.mrb[0].mxu0
      %v1185 = vadd.f32 0.0, %v1184
      %v1186 = vpop.f32.mrb[0].mxu0
      %1187 = vmatprep.mubr.bf16.mxu0 0
      %1188 = vmatmul.mubr.bf16.gmra.mrb[0].mxu0 %v580
      %v1189 = vpop.f32.mrb[0].mxu0
      %v1190 = vadd.f32 0.0, %v1189
      %v1191 = vpop.f32.mrb[0].mxu0
      %v1192 = vpop.f32.mrb[0].mxu0
      %v1193 = vadd.f32 0.0, %v1192
      %v1194 = vpop.f32.mrb[0].mxu0
      %1195 = vmatprep.mubr.bf16.mxu0 0
      %1196 = vmatmul.mubr.bf16.gmra.mrb[0].mxu0 %v583
      %v1197 = vpop.f32.mrb[0].mxu0
      %v1198 = vadd.f32 0.0, %v1197
      %v1199 = vpop.f32.mrb[0].mxu0
      %v1200 = vpop.f32.mrb[0].mxu0
      %v1201 = vadd.f32 0.0, %v1200
      %v1202 = vpop.f32.mrb[0].mxu0
      %1203 = vmatprep.mubr.bf16.mxu0 0
      %1204 = vmatmul.mubr.bf16.gmra.mrb[0].mxu0 %v586
      %v1205 = vpop.f32.mrb[0].mxu0
      %v1206 = vadd.f32 0.0, %v1205
      %v1207 = vpop.f32.mrb[0].mxu0
      %v1208 = vpop.f32.mrb[0].mxu0
      %v1209 = vadd.f32 0.0, %v1208
      %v1210 = vpop.f32.mrb[0].mxu0
      %1211 = vmatprep.mubr.bf16.mxu0 0
      %1212 = vmatmul.mubr.bf16.gmra.mrb[0].mxu0 %v589
      %v1213 = vpop.f32.mrb[0].mxu0
      %v1214 = vadd.f32 0.0, %v1213
      %v1215 = vpop.f32.mrb[0].mxu0
      %v1216 = vpop.f32.mrb[0].mxu0
      %v1217 = vadd.f32 0.0, %v1216
      %v1218 = vpop.f32.mrb[0].mxu0
      %1219 = vmatprep.mubr.bf16.mxu0 0
      %1220 = vmatmul.mubr.bf16.gmra.mrb[0].mxu0 %v592
      %v1221 = vpop.f32.mrb[0].mxu0
      %v1222 = vadd.f32 0.0, %v1221
      %v1223 = vpop.f32.mrb[0].mxu0
      %v1224 = vpop.f32.mrb[0].mxu0
      %v1225 = vadd.f32 0.0, %v1224
      %v1226 = vpop.f32.mrb[0].mxu0
      %1227 = vmatprep.mubr.bf16.mxu0 0
      %1228 = vmatmul.mubr.bf16.gmra.mrb[0].mxu0 %v595
      %v1229 = vpop.f32.mrb[0].mxu0
      %v1230 = vadd.f32 0.0, %v1229
      %v1231 = vpop.f32.mrb[0].mxu0
      %v1232 = vpop.f32.mrb[0].mxu0
      %v1233 = vadd.f32 0.0, %v1232
      %v1234 = vpop.f32.mrb[0].mxu0
      %1235 = vmatprep.mubr.bf16.mxu0 0
      %1236 = vmatmul.mubr.bf16.gmra.mrb[0].mxu0 %v598
      %v1237 = vpop.f32.mrb[0].mxu0
      %v1238 = vadd.f32 0.0, %v1237
      %v1239 = vpop.f32.mrb[0].mxu0
      %v1240 = vpop.f32.mrb[0].mxu0
      %v1241 = vadd.f32 0.0, %v1240
      %v1242 = vpop.f32.mrb[0].mxu0
      %1243 = vdwg.mxu0
      %v1244 = vld [vmem:[%s8] sm:$0x1]
      %v1245 = vld [vmem:[%s8 + $0x1] sm:$0x1]
      %v1246 = vsel %vm441, %v1182, 0.0
      %1247 = vadd.xlane.f32.xlu0 %v1246
      %v1248 = vpop.xlane.xlu0 %1247
      %v1249 = vsel %vm441, %v1185, 0.0
      %1250 = vadd.xlane.f32.xlu0 %v1249
      %v1251 = vpop.xlane.xlu0 %1250
      %v1252 = vsel %vm441, %v1190, 0.0
      %1253 = vadd.xlane.f32.xlu0 %v1252
      %v1254 = vpop.xlane.xlu0 %1253
      %v1255 = vsel %vm441, %v1193, 0.0
      %1256 = vadd.xlane.f32.xlu0 %v1255
      %v1257 = vpop.xlane.xlu0 %1256
      %v1258 = vsel %vm441, %v1198, 0.0
      %1259 = vadd.xlane.f32.xlu0 %v1258
      %v1260 = vpop.xlane.xlu0 %1259
      %v1261 = vsel %vm441, %v1201, 0.0
      %1262 = vadd.xlane.f32.xlu0 %v1261
      %v1263 = vpop.xlane.xlu0 %1262
      %v1264 = vsel %vm441, %v1206, 0.0
      %1265 = vadd.xlane.f32.xlu0 %v1264
      %v1266 = vpop.xlane.xlu0 %1265
      %v1267 = vsel %vm441, %v1209, 0.0
      %1268 = vadd.xlane.f32.xlu0 %v1267
      %v1269 = vpop.xlane.xlu0 %1268
      %v1270 = vsel %vm441, %v1214, 0.0
      %1271 = vadd.xlane.f32.xlu0 %v1270
      %v1272 = vpop.xlane.xlu0 %1271
      %v1273 = vsel %vm441, %v1217, 0.0
      %1274 = vadd.xlane.f32.xlu0 %v1273
      %v1275 = vpop.xlane.xlu0 %1274
      %v1276 = vsel %vm441, %v1222, 0.0
      %1277 = vadd.xlane.f32.xlu0 %v1276
      %v1278 = vpop.xlane.xlu0 %1277
      %v1279 = vsel %vm441, %v1225, 0.0
      %1280 = vadd.xlane.f32.xlu0 %v1279
      %v1281 = vpop.xlane.xlu0 %1280
      %v1282 = vsel %vm441, %v1230, 0.0
      %1283 = vadd.xlane.f32.xlu0 %v1282
      %v1284 = vpop.xlane.xlu0 %1283
      %v1285 = vsel %vm441, %v1233, 0.0
      %1286 = vadd.xlane.f32.xlu0 %v1285
      %v1287 = vpop.xlane.xlu0 %1286
      %v1288 = vsel %vm441, %v1238, 0.0
      %1289 = vadd.xlane.f32.xlu0 %v1288
      %v1290 = vpop.xlane.xlu0 %1289
      %v1291 = vsel %vm441, %v1241, 0.0
      %1292 = vadd.xlane.f32.xlu0 %v1291
      %v1293 = vpop.xlane.xlu0 %1292
      %v1294 = vrcp.pop 16.0
      %v1295 = vmul.f32 %v1248, %v1294
      %v1296 = vmul.f32 %v1251, %v1294
      %v1297 = vmul.f32 %v1254, %v1294
      %v1298 = vmul.f32 %v1257, %v1294
      %v1299 = vmul.f32 %v1260, %v1294
      %v1300 = vmul.f32 %v1263, %v1294
      %v1301 = vmul.f32 %v1266, %v1294
      %v1302 = vmul.f32 %v1269, %v1294
      %v1303 = vmul.f32 %v1272, %v1294
      %v1304 = vmul.f32 %v1275, %v1294
      %v1305 = vmul.f32 %v1278, %v1294
      %v1306 = vmul.f32 %v1281, %v1294
      %v1307 = vmul.f32 %v1284, %v1294
      %v1308 = vmul.f32 %v1287, %v1294
      %v1309 = vmul.f32 %v1290, %v1294
      %v1310 = vmul.f32 %v1293, %v1294
      %v1311 = vsub.f32 %v1182, %v1295
      %v1312 = vsub.f32 %v1185, %v1296
      %v1313 = vsub.f32 %v1190, %v1297
      %v1314 = vsub.f32 %v1193, %v1298
      %v1315 = vsub.f32 %v1198, %v1299
      %v1316 = vsub.f32 %v1201, %v1300
      %v1317 = vsub.f32 %v1206, %v1301
      %v1318 = vsub.f32 %v1209, %v1302
      %v1319 = vsub.f32 %v1214, %v1303
      %v1320 = vsub.f32 %v1217, %v1304
      %v1321 = vsub.f32 %v1222, %v1305
      %v1322 = vsub.f32 %v1225, %v1306
      %v1323 = vsub.f32 %v1230, %v1307
      %v1324 = vsub.f32 %v1233, %v1308
      %v1325 = vsub.f32 %v1238, %v1309
      %v1326 = vsub.f32 %v1241, %v1310
      %v1327 = vmul.f32 %v1311, %v1311
      %v1328 = vmul.f32 %v1312, %v1312
      %v1329 = vmul.f32 %v1313, %v1313
      %v1330 = vmul.f32 %v1314, %v1314
      %v1331 = vmul.f32 %v1315, %v1315
      %v1332 = vmul.f32 %v1316, %v1316
      %v1333 = vmul.f32 %v1317, %v1317
      %v1334 = vmul.f32 %v1318, %v1318
      %v1335 = vmul.f32 %v1319, %v1319
      %v1336 = vmul.f32 %v1320, %v1320
      %v1337 = vmul.f32 %v1321, %v1321
      %v1338 = vmul.f32 %v1322, %v1322
      %v1339 = vmul.f32 %v1323, %v1323
      %v1340 = vmul.f32 %v1324, %v1324
      %v1341 = vmul.f32 %v1325, %v1325
      %v1342 = vmul.f32 %v1326, %v1326
      %v1343 = vsel %vm441, %v1327, 0.0
      %1344 = vadd.xlane.f32.xlu0 %v1343
      %v1345 = vpop.xlane.xlu0 %1344
      %v1346 = vsel %vm441, %v1328, 0.0
      %1347 = vadd.xlane.f32.xlu0 %v1346
      %v1348 = vpop.xlane.xlu0 %1347
      %v1349 = vsel %vm441, %v1329, 0.0
      %1350 = vadd.xlane.f32.xlu0 %v1349
      %v1351 = vpop.xlane.xlu0 %1350
      %v1352 = vsel %vm441, %v1330, 0.0
      %1353 = vadd.xlane.f32.xlu0 %v1352
      %v1354 = vpop.xlane.xlu0 %1353
      %v1355 = vsel %vm441, %v1331, 0.0
      %1356 = vadd.xlane.f32.xlu0 %v1355
      %v1357 = vpop.xlane.xlu0 %1356
      %v1358 = vsel %vm441, %v1332, 0.0
      %1359 = vadd.xlane.f32.xlu0 %v1358
      %v1360 = vpop.xlane.xlu0 %1359
      %v1361 = vsel %vm441, %v1333, 0.0
      %1362 = vadd.xlane.f32.xlu0 %v1361
      %v1363 = vpop.xlane.xlu0 %1362
      %v1364 = vsel %vm441, %v1334, 0.0
      %1365 = vadd.xlane.f32.xlu0 %v1364
      %v1366 = vpop.xlane.xlu0 %1365
      %v1367 = vsel %vm441, %v1335, 0.0
      %1368 = vadd.xlane.f32.xlu0 %v1367
      %v1369 = vpop.xlane.xlu0 %1368
      %v1370 = vsel %vm441, %v1336, 0.0
      %1371 = vadd.xlane.f32.xlu0 %v1370
      %v1372 = vpop.xlane.xlu0 %1371
      %v1373 = vsel %vm441, %v1337, 0.0
      %1374 = vadd.xlane.f32.xlu0 %v1373
      %v1375 = vpop.xlane.xlu0 %1374
      %v1376 = vsel %vm441, %v1338, 0.0
      %1377 = vadd.xlane.f32.xlu0 %v1376
      %v1378 = vpop.xlane.xlu0 %1377
      %v1379 = vsel %vm441, %v1339, 0.0
      %1380 = vadd.xlane.f32.xlu0 %v1379
      %v1381 = vpop.xlane.xlu0 %1380
      %v1382 = vsel %vm441, %v1340, 0.0
      %1383 = vadd.xlane.f32.xlu0 %v1382
      %v1384 = vpop.xlane.xlu0 %1383
      %v1385 = vsel %vm441, %v1341, 0.0
      %1386 = vadd.xlane.f32.xlu0 %v1385
      %v1387 = vpop.xlane.xlu0 %1386
      %v1388 = vsel %vm441, %v1342, 0.0
      %1389 = vadd.xlane.f32.xlu0 %v1388
      %v1390 = vpop.xlane.xlu0 %1389
      %v1391 = vmul.f32 %v1345, %v1294
      %v1392 = vmul.f32 %v1348, %v1294
      %v1393 = vmul.f32 %v1351, %v1294
      %v1394 = vmul.f32 %v1354, %v1294
      %v1395 = vmul.f32 %v1357, %v1294
      %v1396 = vmul.f32 %v1360, %v1294
      %v1397 = vmul.f32 %v1363, %v1294
      %v1398 = vmul.f32 %v1366, %v1294
      %v1399 = vmul.f32 %v1369, %v1294
      %v1400 = vmul.f32 %v1372, %v1294
      %v1401 = vmul.f32 %v1375, %v1294
      %v1402 = vmul.f32 %v1378, %v1294
      %v1403 = vmul.f32 %v1381, %v1294
      %v1404 = vmul.f32 %v1384, %v1294
      %v1405 = vmul.f32 %v1387, %v1294
      %v1406 = vmul.f32 %v1390, %v1294
      %v1407 = vadd.f32 %v1391, 1e-05
      %v1408 = vadd.f32 %v1392, 1e-05
      %v1409 = vadd.f32 %v1393, 1e-05
      %v1410 = vadd.f32 %v1394, 1e-05
      %v1411 = vadd.f32 %v1395, 1e-05
      %v1412 = vadd.f32 %v1396, 1e-05
      %v1413 = vadd.f32 %v1397, 1e-05
      %v1414 = vadd.f32 %v1398, 1e-05
      %v1415 = vadd.f32 %v1399, 1e-05
      %v1416 = vadd.f32 %v1400, 1e-05
      %v1417 = vadd.f32 %v1401, 1e-05
      %v1418 = vadd.f32 %v1402, 1e-05
      %v1419 = vadd.f32 %v1403, 1e-05
      %v1420 = vadd.f32 %v1404, 1e-05
      %v1421 = vadd.f32 %v1405, 1e-05
      %v1422 = vadd.f32 %v1406, 1e-05
      %v1423 = vrsqrt.pop %v1407
      %v1424 = vrsqrt.pop %v1408
      %v1425 = vrsqrt.pop %v1409
      %v1426 = vrsqrt.pop %v1410
      %v1427 = vrsqrt.pop %v1411
      %v1428 = vrsqrt.pop %v1412
      %v1429 = vrsqrt.pop %v1413
      %v1430 = vrsqrt.pop %v1414
      %v1431 = vrsqrt.pop %v1415
      %v1432 = vrsqrt.pop %v1416
      %v1433 = vrsqrt.pop %v1417
      %v1434 = vrsqrt.pop %v1418
      %v1435 = vrsqrt.pop %v1419
      %v1436 = vrsqrt.pop %v1420
      %v1437 = vrsqrt.pop %v1421
      %v1438 = vrsqrt.pop %v1422
      %v1439 = vmul.f32 %v1311, %v1423
      %v1440 = vmul.f32 %v1312, %v1424
      %v1441 = vmul.f32 %v1313, %v1425
      %v1442 = vmul.f32 %v1314, %v1426
      %v1443 = vmul.f32 %v1315, %v1427
      %v1444 = vmul.f32 %v1316, %v1428
      %v1445 = vmul.f32 %v1317, %v1429
      %v1446 = vmul.f32 %v1318, %v1430
      %v1447 = vmul.f32 %v1319, %v1431
      %v1448 = vmul.f32 %v1320, %v1432
      %v1449 = vmul.f32 %v1321, %v1433
      %v1450 = vmul.f32 %v1322, %v1434
      %v1451 = vmul.f32 %v1323, %v1435
      %v1452 = vmul.f32 %v1324, %v1436
      %v1453 = vmul.f32 %v1325, %v1437
      %v1454 = vmul.f32 %v1326, %v1438
      %v1455 = vlaneseq
      %v1456 = vshrl.u32 %v1455, 7
      %v1457 = vsub.s32 0, %v1456
      %v1458 = vrot.slane %v1244, %v1457
      %v1459 = vmul.f32 %v1439, %v1458
      %v1460 = vmul.f32 %v1440, %v1458
      %v1461 = vmul.f32 %v1441, %v1458
      %v1462 = vmul.f32 %v1442, %v1458
      %v1463 = vmul.f32 %v1443, %v1458
      %v1464 = vmul.f32 %v1444, %v1458
      %v1465 = vmul.f32 %v1445, %v1458
      %v1466 = vmul.f32 %v1446, %v1458
      %v1467 = vmul.f32 %v1447, %v1458
      %v1468 = vmul.f32 %v1448, %v1458
      %v1469 = vmul.f32 %v1449, %v1458
      %v1470 = vmul.f32 %v1450, %v1458
      %v1471 = vmul.f32 %v1451, %v1458
      %v1472 = vmul.f32 %v1452, %v1458
      %v1473 = vmul.f32 %v1453, %v1458
      %v1474 = vmul.f32 %v1454, %v1458
      %v1475 = vlaneseq
      %v1476 = vshrl.u32 %v1475, 7
      %v1477 = vsub.s32 0, %v1476
      %v1478 = vrot.slane %v1245, %v1477
      %v1479 = vadd.f32 %v1459, %v1478
      %v1480 = vadd.f32 %v1460, %v1478
      %v1481 = vadd.f32 %v1461, %v1478
      %v1482 = vadd.f32 %v1462, %v1478
      %v1483 = vadd.f32 %v1463, %v1478
      %v1484 = vadd.f32 %v1464, %v1478
      %v1485 = vadd.f32 %v1465, %v1478
      %v1486 = vadd.f32 %v1466, %v1478
      %v1487 = vadd.f32 %v1467, %v1478
      %v1488 = vadd.f32 %v1468, %v1478
      %v1489 = vadd.f32 %v1469, %v1478
      %v1490 = vadd.f32 %v1470, %v1478
      %v1491 = vadd.f32 %v1471, %v1478
      %v1492 = vadd.f32 %v1472, %v1478
      %v1493 = vadd.f32 %v1473, %v1478
      %v1494 = vadd.f32 %v1474, %v1478
      %v1495 = vmax.f32 %v1479, 0.0
      %v1496 = vmax.f32 %v1480, 0.0
      %v1497 = vmax.f32 %v1481, 0.0
      %v1498 = vmax.f32 %v1482, 0.0
      %v1499 = vmax.f32 %v1483, 0.0
      %v1500 = vmax.f32 %v1484, 0.0
      %v1501 = vmax.f32 %v1485, 0.0
      %v1502 = vmax.f32 %v1486, 0.0
      %v1503 = vmax.f32 %v1487, 0.0
      %v1504 = vmax.f32 %v1488, 0.0
      %v1505 = vmax.f32 %v1489, 0.0
      %v1506 = vmax.f32 %v1490, 0.0
      %v1507 = vmax.f32 %v1491, 0.0
      %v1508 = vmax.f32 %v1492, 0.0
      %v1509 = vmax.f32 %v1493, 0.0
      %v1510 = vmax.f32 %v1494, 0.0
      %v1511 = vld [vmem:[%s8 + $0x2] sm:$0x1]
      %v1512 = vlaneseq
      %v1513 = vshrl.u32 %v1512, 7
      %v1514 = vsub.s32 0, %v1513
      %v1515 = vrot.slane %v1511, %v1514
      %v1516 = vmul.f32 %v1495, %v1515
      %v1517 = vmul.f32 %v1496, %v1515
      %v1518 = vmul.f32 %v1497, %v1515
      %v1519 = vmul.f32 %v1498, %v1515
      %v1520 = vmul.f32 %v1499, %v1515
      %v1521 = vmul.f32 %v1500, %v1515
      %v1522 = vmul.f32 %v1501, %v1515
      %v1523 = vmul.f32 %v1502, %v1515
      %v1524 = vmul.f32 %v1503, %v1515
      %v1525 = vmul.f32 %v1504, %v1515
      %v1526 = vmul.f32 %v1505, %v1515
      %v1527 = vmul.f32 %v1506, %v1515
      %v1528 = vmul.f32 %v1507, %v1515
      %v1529 = vmul.f32 %v1508, %v1515
      %v1530 = vmul.f32 %v1509, %v1515
      %v1531 = vmul.f32 %v1510, %v1515
      %v1532 = vsel %vm441, %v1516, 0.0
      %1533 = vadd.xlane.f32.xlu0 %v1532
      %v1534 = vpop.xlane.xlu0 %1533
      %v1535 = vsel %vm441, %v1517, 0.0
      %1536 = vadd.xlane.f32.xlu0 %v1535
      %v1537 = vpop.xlane.xlu0 %1536
      %v1538 = vsel %vm441, %v1518, 0.0
      %1539 = vadd.xlane.f32.xlu0 %v1538
      %v1540 = vpop.xlane.xlu0 %1539
      %v1541 = vsel %vm441, %v1519, 0.0
      %1542 = vadd.xlane.f32.xlu0 %v1541
      %v1543 = vpop.xlane.xlu0 %1542
      %v1544 = vsel %vm441, %v1520, 0.0
      %1545 = vadd.xlane.f32.xlu0 %v1544
      %v1546 = vpop.xlane.xlu0 %1545
      %v1547 = vsel %vm441, %v1521, 0.0
      %1548 = vadd.xlane.f32.xlu0 %v1547
      %v1549 = vpop.xlane.xlu0 %1548
      %v1550 = vsel %vm441, %v1522, 0.0
      %1551 = vadd.xlane.f32.xlu0 %v1550
      %v1552 = vpop.xlane.xlu0 %1551
      %v1553 = vsel %vm441, %v1523, 0.0
      %1554 = vadd.xlane.f32.xlu0 %v1553
      %v1555 = vpop.xlane.xlu0 %1554
      %v1556 = vsel %vm441, %v1524, 0.0
      %1557 = vadd.xlane.f32.xlu0 %v1556
      %v1558 = vpop.xlane.xlu0 %1557
      %v1559 = vsel %vm441, %v1525, 0.0
      %1560 = vadd.xlane.f32.xlu0 %v1559
      %v1561 = vpop.xlane.xlu0 %1560
      %v1562 = vsel %vm441, %v1526, 0.0
      %1563 = vadd.xlane.f32.xlu0 %v1562
      %v1564 = vpop.xlane.xlu0 %1563
      %v1565 = vsel %vm441, %v1527, 0.0
      %1566 = vadd.xlane.f32.xlu0 %v1565
      %v1567 = vpop.xlane.xlu0 %1566
      %v1568 = vsel %vm441, %v1528, 0.0
      %1569 = vadd.xlane.f32.xlu0 %v1568
      %v1570 = vpop.xlane.xlu0 %1569
      %v1571 = vsel %vm441, %v1529, 0.0
      %1572 = vadd.xlane.f32.xlu0 %v1571
      %v1573 = vpop.xlane.xlu0 %1572
      %v1574 = vsel %vm441, %v1530, 0.0
      %1575 = vadd.xlane.f32.xlu0 %v1574
      %v1576 = vpop.xlane.xlu0 %1575
      %v1577 = vsel %vm441, %v1531, 0.0
      %1578 = vadd.xlane.f32.xlu0 %v1577
      %v1579 = vpop.xlane.xlu0 %1578
      %v1580 = vld [vmem:[%s8 + $0x3] sm:$0x1]
      %v1581 = vlaneseq
      %v1582 = vshrl.u32 %v1581, 7
      %v1583 = vsub.s32 0, %v1582
      %v1584 = vrot.slane %v1580, %v1583
      %v1585 = vadd.f32 %v1534, %v1584
      %v1586 = vadd.f32 %v1537, %v1584
      %v1587 = vadd.f32 %v1540, %v1584
      %v1588 = vadd.f32 %v1543, %v1584
      %v1589 = vadd.f32 %v1546, %v1584
      %v1590 = vadd.f32 %v1549, %v1584
      %v1591 = vadd.f32 %v1552, %v1584
      %v1592 = vadd.f32 %v1555, %v1584
      %v1593 = vadd.f32 %v1558, %v1584
      %v1594 = vadd.f32 %v1561, %v1584
      %v1595 = vadd.f32 %v1564, %v1584
      %v1596 = vadd.f32 %v1567, %v1584
      %v1597 = vadd.f32 %v1570, %v1584
      %v1598 = vadd.f32 %v1573, %v1584
      %v1599 = vadd.f32 %v1576, %v1584
      %v1600 = vadd.f32 %v1579, %v1584
      %v1601 = vxor.u32 %v1585, 2147483648
      %v1602 = vxor.u32 %v1586, 2147483648
      %v1603 = vxor.u32 %v1587, 2147483648
      %v1604 = vxor.u32 %v1588, 2147483648
      %v1605 = vxor.u32 %v1589, 2147483648
      %v1606 = vxor.u32 %v1590, 2147483648
      %v1607 = vxor.u32 %v1591, 2147483648
      %v1608 = vxor.u32 %v1592, 2147483648
      %v1609 = vxor.u32 %v1593, 2147483648
      %v1610 = vxor.u32 %v1594, 2147483648
      %v1611 = vxor.u32 %v1595, 2147483648
      %v1612 = vxor.u32 %v1596, 2147483648
      %v1613 = vxor.u32 %v1597, 2147483648
      %v1614 = vxor.u32 %v1598, 2147483648
      %v1615 = vxor.u32 %v1599, 2147483648
      %v1616 = vxor.u32 %v1600, 2147483648
      %v1617 = vmul.f32 %v1601, 1.442695
      %v1618 = vpow.pop %v1617
      %v1619 = vmul.f32 %v1602, 1.442695
      %v1620 = vpow.pop %v1619
      %v1621 = vmul.f32 %v1603, 1.442695
      %v1622 = vpow.pop %v1621
      %v1623 = vmul.f32 %v1604, 1.442695
      %v1624 = vpow.pop %v1623
      %v1625 = vmul.f32 %v1605, 1.442695
      %v1626 = vpow.pop %v1625
      %v1627 = vmul.f32 %v1606, 1.442695
      %v1628 = vpow.pop %v1627
      %v1629 = vmul.f32 %v1607, 1.442695
      %v1630 = vpow.pop %v1629
      %v1631 = vmul.f32 %v1608, 1.442695
      %v1632 = vpow.pop %v1631
      %v1633 = vmul.f32 %v1609, 1.442695
      %v1634 = vpow.pop %v1633
      %v1635 = vmul.f32 %v1610, 1.442695
      %v1636 = vpow.pop %v1635
      %v1637 = vmul.f32 %v1611, 1.442695
      %v1638 = vpow.pop %v1637
      %v1639 = vmul.f32 %v1612, 1.442695
      %v1640 = vpow.pop %v1639
      %v1641 = vmul.f32 %v1613, 1.442695
      %v1642 = vpow.pop %v1641
      %v1643 = vmul.f32 %v1614, 1.442695
      %v1644 = vpow.pop %v1643
      %v1645 = vmul.f32 %v1615, 1.442695
      %v1646 = vpow.pop %v1645
      %v1647 = vmul.f32 %v1616, 1.442695
      %v1648 = vpow.pop %v1647
      %v1649 = vadd.f32 %v1618, 1.0
      %v1650 = vadd.f32 %v1620, 1.0
      %v1651 = vadd.f32 %v1622, 1.0
      %v1652 = vadd.f32 %v1624, 1.0
      %v1653 = vadd.f32 %v1626, 1.0
      %v1654 = vadd.f32 %v1628, 1.0
      %v1655 = vadd.f32 %v1630, 1.0
      %v1656 = vadd.f32 %v1632, 1.0
      %v1657 = vadd.f32 %v1634, 1.0
      %v1658 = vadd.f32 %v1636, 1.0
      %v1659 = vadd.f32 %v1638, 1.0
      %v1660 = vadd.f32 %v1640, 1.0
      %v1661 = vadd.f32 %v1642, 1.0
      %v1662 = vadd.f32 %v1644, 1.0
      %v1663 = vadd.f32 %v1646, 1.0
      %v1664 = vadd.f32 %v1648, 1.0
      %v1665 = vrcp.pop %v1649
      %v1666 = vmul.f32 1.0, %v1665
      %v1667 = vrcp.pop %v1650
      %v1668 = vmul.f32 1.0, %v1667
      %v1669 = vrcp.pop %v1651
      %v1670 = vmul.f32 1.0, %v1669
      %v1671 = vrcp.pop %v1652
      %v1672 = vmul.f32 1.0, %v1671
      %v1673 = vrcp.pop %v1653
      %v1674 = vmul.f32 1.0, %v1673
      %v1675 = vrcp.pop %v1654
      %v1676 = vmul.f32 1.0, %v1675
      %v1677 = vrcp.pop %v1655
      %v1678 = vmul.f32 1.0, %v1677
      %v1679 = vrcp.pop %v1656
      %v1680 = vmul.f32 1.0, %v1679
      %v1681 = vrcp.pop %v1657
      %v1682 = vmul.f32 1.0, %v1681
      %v1683 = vrcp.pop %v1658
      %v1684 = vmul.f32 1.0, %v1683
      %v1685 = vrcp.pop %v1659
      %v1686 = vmul.f32 1.0, %v1685
      %v1687 = vrcp.pop %v1660
      %v1688 = vmul.f32 1.0, %v1687
      %v1689 = vrcp.pop %v1661
      %v1690 = vmul.f32 1.0, %v1689
      %v1691 = vrcp.pop %v1662
      %v1692 = vmul.f32 1.0, %v1691
      %v1693 = vrcp.pop %v1663
      %v1694 = vmul.f32 1.0, %v1693
      %v1695 = vrcp.pop %v1664
      %v1696 = vmul.f32 1.0, %v1695
      %v1697 = vxor.u32 %v1069, 2147483648
      %v1698 = vxor.u32 %v1072, 2147483648
      %v1699 = vxor.u32 %v1077, 2147483648
      %v1700 = vxor.u32 %v1080, 2147483648
      %v1701 = vxor.u32 %v1085, 2147483648
      %v1702 = vxor.u32 %v1088, 2147483648
      %v1703 = vxor.u32 %v1093, 2147483648
      %v1704 = vxor.u32 %v1096, 2147483648
      %v1705 = vxor.u32 %v1101, 2147483648
      %v1706 = vxor.u32 %v1104, 2147483648
      %v1707 = vxor.u32 %v1109, 2147483648
      %v1708 = vxor.u32 %v1112, 2147483648
      %v1709 = vxor.u32 %v1117, 2147483648
      %v1710 = vxor.u32 %v1120, 2147483648
      %v1711 = vxor.u32 %v1125, 2147483648
      %v1712 = vxor.u32 %v1128, 2147483648
      %v1713 = vmul.f32 %v1697, 1.442695
      %v1714 = vpow.pop %v1713
      %v1715 = vmul.f32 %v1698, 1.442695
      %v1716 = vpow.pop %v1715
      %v1717 = vmul.f32 %v1699, 1.442695
      %v1718 = vpow.pop %v1717
      %v1719 = vmul.f32 %v1700, 1.442695
      %v1720 = vpow.pop %v1719
      %v1721 = vmul.f32 %v1701, 1.442695
      %v1722 = vpow.pop %v1721
      %v1723 = vmul.f32 %v1702, 1.442695
      %v1724 = vpow.pop %v1723
      %v1725 = vmul.f32 %v1703, 1.442695
      %v1726 = vpow.pop %v1725
      %v1727 = vmul.f32 %v1704, 1.442695
      %v1728 = vpow.pop %v1727
      %v1729 = vmul.f32 %v1705, 1.442695
      %v1730 = vpow.pop %v1729
      %v1731 = vmul.f32 %v1706, 1.442695
      %v1732 = vpow.pop %v1731
      %v1733 = vmul.f32 %v1707, 1.442695
      %v1734 = vpow.pop %v1733
      %v1735 = vmul.f32 %v1708, 1.442695
      %v1736 = vpow.pop %v1735
      %v1737 = vmul.f32 %v1709, 1.442695
      %v1738 = vpow.pop %v1737
      %v1739 = vmul.f32 %v1710, 1.442695
      %v1740 = vpow.pop %v1739
      %v1741 = vmul.f32 %v1711, 1.442695
      %v1742 = vpow.pop %v1741
      %v1743 = vmul.f32 %v1712, 1.442695
      %v1744 = vpow.pop %v1743
      %v1745 = vadd.f32 %v1714, 1.0
      %v1746 = vadd.f32 %v1716, 1.0
      %v1747 = vadd.f32 %v1718, 1.0
      %v1748 = vadd.f32 %v1720, 1.0
      %v1749 = vadd.f32 %v1722, 1.0
      %v1750 = vadd.f32 %v1724, 1.0
      %v1751 = vadd.f32 %v1726, 1.0
      %v1752 = vadd.f32 %v1728, 1.0
      %v1753 = vadd.f32 %v1730, 1.0
      %v1754 = vadd.f32 %v1732, 1.0
      %v1755 = vadd.f32 %v1734, 1.0
      %v1756 = vadd.f32 %v1736, 1.0
      %v1757 = vadd.f32 %v1738, 1.0
      %v1758 = vadd.f32 %v1740, 1.0
      %v1759 = vadd.f32 %v1742, 1.0
      %v1760 = vadd.f32 %v1744, 1.0
      %v1761 = vrcp.pop %v1745
      %v1762 = vmul.f32 1.0, %v1761
      %v1763 = vrcp.pop %v1746
      %v1764 = vmul.f32 1.0, %v1763
      %v1765 = vrcp.pop %v1747
      %v1766 = vmul.f32 1.0, %v1765
      %v1767 = vrcp.pop %v1748
      %v1768 = vmul.f32 1.0, %v1767
      %v1769 = vrcp.pop %v1749
      %v1770 = vmul.f32 1.0, %v1769
      %v1771 = vrcp.pop %v1750
      %v1772 = vmul.f32 1.0, %v1771
      %v1773 = vrcp.pop %v1751
      %v1774 = vmul.f32 1.0, %v1773
      %v1775 = vrcp.pop %v1752
      %v1776 = vmul.f32 1.0, %v1775
      %v1777 = vrcp.pop %v1753
      %v1778 = vmul.f32 1.0, %v1777
      %v1779 = vrcp.pop %v1754
      %v1780 = vmul.f32 1.0, %v1779
      %v1781 = vrcp.pop %v1755
      %v1782 = vmul.f32 1.0, %v1781
      %v1783 = vrcp.pop %v1756
      %v1784 = vmul.f32 1.0, %v1783
      %v1785 = vrcp.pop %v1757
      %v1786 = vmul.f32 1.0, %v1785
      %v1787 = vrcp.pop %v1758
      %v1788 = vmul.f32 1.0, %v1787
      %v1789 = vrcp.pop %v1759
      %v1790 = vmul.f32 1.0, %v1789
      %v1791 = vrcp.pop %v1760
      %v1792 = vmul.f32 1.0, %v1791
      %1794 = vset.pattern.permute.xlu0 0
      %1795 = vperm.xlu0 %1794, %v1666
      %v1796 = vpop.permute.xlu0 %1795
      %1799 = vset.pattern.permute.xlu0 0
      %1800 = vperm.xlu0 %1799, %v1668
      %v1801 = vpop.permute.xlu0 %1800
      %1804 = vset.pattern.permute.xlu0 0
      %1805 = vperm.xlu0 %1804, %v1670
      %v1806 = vpop.permute.xlu0 %1805
      %1809 = vset.pattern.permute.xlu0 0
      %1810 = vperm.xlu0 %1809, %v1672
      %v1811 = vpop.permute.xlu0 %1810
      %1814 = vset.pattern.permute.xlu0 0
      %1815 = vperm.xlu0 %1814, %v1674
      %v1816 = vpop.permute.xlu0 %1815
      %1819 = vset.pattern.permute.xlu0 0
      %1820 = vperm.xlu0 %1819, %v1676
      %v1821 = vpop.permute.xlu0 %1820
      %1824 = vset.pattern.permute.xlu0 0
      %1825 = vperm.xlu0 %1824, %v1678
      %v1826 = vpop.permute.xlu0 %1825
      %1829 = vset.pattern.permute.xlu0 0
      %1830 = vperm.xlu0 %1829, %v1680
      %v1831 = vpop.permute.xlu0 %1830
      %1834 = vset.pattern.permute.xlu0 0
      %1835 = vperm.xlu0 %1834, %v1682
      %v1836 = vpop.permute.xlu0 %1835
      %1839 = vset.pattern.permute.xlu0 0
      %1840 = vperm.xlu0 %1839, %v1684
      %v1841 = vpop.permute.xlu0 %1840
      %1844 = vset.pattern.permute.xlu0 0
      %1845 = vperm.xlu0 %1844, %v1686
      %v1846 = vpop.permute.xlu0 %1845
      %1849 = vset.pattern.permute.xlu0 0
      %1850 = vperm.xlu0 %1849, %v1688
      %v1851 = vpop.permute.xlu0 %1850
      %1854 = vset.pattern.permute.xlu0 0
      %1855 = vperm.xlu0 %1854, %v1690
      %v1856 = vpop.permute.xlu0 %1855
      %1859 = vset.pattern.permute.xlu0 0
      %1860 = vperm.xlu0 %1859, %v1692
      %v1861 = vpop.permute.xlu0 %1860
      %1864 = vset.pattern.permute.xlu0 0
      %1865 = vperm.xlu0 %1864, %v1694
      %v1866 = vpop.permute.xlu0 %1865
      %1869 = vset.pattern.permute.xlu0 0
      %1870 = vperm.xlu0 %1869, %v1696
      %v1871 = vpop.permute.xlu0 %1870
      %v1873 = vmul.f32 %v1796, %v1762
      %v1874 = vmul.f32 %v1801, %v1764
      %v1875 = vmul.f32 %v1806, %v1766
      %v1876 = vmul.f32 %v1811, %v1768
      %v1877 = vmul.f32 %v1816, %v1770
      %v1878 = vmul.f32 %v1821, %v1772
      %v1879 = vmul.f32 %v1826, %v1774
      %v1880 = vmul.f32 %v1831, %v1776
      %v1881 = vmul.f32 %v1836, %v1778
      %v1882 = vmul.f32 %v1841, %v1780
      %v1883 = vmul.f32 %v1846, %v1782
      %v1884 = vmul.f32 %v1851, %v1784
      %v1885 = vmul.f32 %v1856, %v1786
      %v1886 = vmul.f32 %v1861, %v1788
      %v1887 = vmul.f32 %v1866, %v1790
      %v1888 = vmul.f32 %v1871, %v1792
      %v1889 = vsub.f32 1.0, %v1666
      %v1890 = vsub.f32 1.0, %v1668
      %v1891 = vsub.f32 1.0, %v1670
      %v1892 = vsub.f32 1.0, %v1672
      %v1893 = vsub.f32 1.0, %v1674
      %v1894 = vsub.f32 1.0, %v1676
      %v1895 = vsub.f32 1.0, %v1678
      %v1896 = vsub.f32 1.0, %v1680
      %v1897 = vsub.f32 1.0, %v1682
      %v1898 = vsub.f32 1.0, %v1684
      %v1899 = vsub.f32 1.0, %v1686
      %v1900 = vsub.f32 1.0, %v1688
      %v1901 = vsub.f32 1.0, %v1690
      %v1902 = vsub.f32 1.0, %v1692
      %v1903 = vsub.f32 1.0, %v1694
      %v1904 = vsub.f32 1.0, %v1696
      %v1905 = vld [vmem:[%s372] sm:$0xff]
      %v1906 = vld [vmem:[%s372 + $0x8] sm:$0xff]
      %v1907 = vld [vmem:[%s372 + $0x10] sm:$0xff]
      %v1908 = vld [vmem:[%s372 + $0x18] sm:$0xff]
      %v1909 = vld [vmem:[%s372 + $0x20] sm:$0xff]
      %v1910 = vld [vmem:[%s372 + $0x28] sm:$0xff]
      %v1911 = vld [vmem:[%s372 + $0x30] sm:$0xff]
      %v1912 = vld [vmem:[%s372 + $0x38] sm:$0xff]
      %v1913 = vld [vmem:[%s372 + $0x40] sm:$0xff]
      %v1914 = vld [vmem:[%s372 + $0x48] sm:$0xff]
      %v1915 = vld [vmem:[%s372 + $0x50] sm:$0xff]
      %v1916 = vld [vmem:[%s372 + $0x58] sm:$0xff]
      %v1917 = vld [vmem:[%s372 + $0x60] sm:$0xff]
      %v1918 = vld [vmem:[%s372 + $0x68] sm:$0xff]
      %v1919 = vld [vmem:[%s372 + $0x70] sm:$0xff]
      %v1920 = vld [vmem:[%s372 + $0x78] sm:$0xff]
      %1922 = vset.pattern.permute.xlu0 0
      %1923 = vperm.xlu0 %1922, %v1889
      %v1924 = vpop.permute.xlu0 %1923
      %1927 = vset.pattern.permute.xlu0 0
      %1928 = vperm.xlu0 %1927, %v1890
      %v1929 = vpop.permute.xlu0 %1928
      %1932 = vset.pattern.permute.xlu0 0
      %1933 = vperm.xlu0 %1932, %v1891
      %v1934 = vpop.permute.xlu0 %1933
      %1937 = vset.pattern.permute.xlu0 0
      %1938 = vperm.xlu0 %1937, %v1892
      %v1939 = vpop.permute.xlu0 %1938
      %1942 = vset.pattern.permute.xlu0 0
      %1943 = vperm.xlu0 %1942, %v1893
      %v1944 = vpop.permute.xlu0 %1943
      %1947 = vset.pattern.permute.xlu0 0
      %1948 = vperm.xlu0 %1947, %v1894
      %v1949 = vpop.permute.xlu0 %1948
      %1952 = vset.pattern.permute.xlu0 0
      %1953 = vperm.xlu0 %1952, %v1895
      %v1954 = vpop.permute.xlu0 %1953
      %1957 = vset.pattern.permute.xlu0 0
      %1958 = vperm.xlu0 %1957, %v1896
      %v1959 = vpop.permute.xlu0 %1958
      %1962 = vset.pattern.permute.xlu0 0
      %1963 = vperm.xlu0 %1962, %v1897
      %v1964 = vpop.permute.xlu0 %1963
      %1967 = vset.pattern.permute.xlu0 0
      %1968 = vperm.xlu0 %1967, %v1898
      %v1969 = vpop.permute.xlu0 %1968
      %1972 = vset.pattern.permute.xlu0 0
      %1973 = vperm.xlu0 %1972, %v1899
      %v1974 = vpop.permute.xlu0 %1973
      %1977 = vset.pattern.permute.xlu0 0
      %1978 = vperm.xlu0 %1977, %v1900
      %v1979 = vpop.permute.xlu0 %1978
      %1982 = vset.pattern.permute.xlu0 0
      %1983 = vperm.xlu0 %1982, %v1901
      %v1984 = vpop.permute.xlu0 %1983
      %1987 = vset.pattern.permute.xlu0 0
      %1988 = vperm.xlu0 %1987, %v1902
      %v1989 = vpop.permute.xlu0 %1988
      %1992 = vset.pattern.permute.xlu0 0
      %1993 = vperm.xlu0 %1992, %v1903
      %v1994 = vpop.permute.xlu0 %1993
      %1997 = vset.pattern.permute.xlu0 0
      %1998 = vperm.xlu0 %1997, %v1904
      %v1999 = vpop.permute.xlu0 %1998
      %v2001 = vmul.f32 %v1924, %v1905
      %v2002 = vmul.f32 %v1929, %v1906
      %v2003 = vmul.f32 %v1934, %v1907
      %v2004 = vmul.f32 %v1939, %v1908
      %v2005 = vmul.f32 %v1944, %v1909
      %v2006 = vmul.f32 %v1949, %v1910
      %v2007 = vmul.f32 %v1954, %v1911
      %v2008 = vmul.f32 %v1959, %v1912
      %v2009 = vmul.f32 %v1964, %v1913
      %v2010 = vmul.f32 %v1969, %v1914
      %v2011 = vmul.f32 %v1974, %v1915
      %v2012 = vmul.f32 %v1979, %v1916
      %v2013 = vmul.f32 %v1984, %v1917
      %v2014 = vmul.f32 %v1989, %v1918
      %v2015 = vmul.f32 %v1994, %v1919
      %v2016 = vmul.f32 %v1999, %v1920
      %v2017 = vadd.f32 %v1873, %v2001
      %v2018 = vadd.f32 %v1874, %v2002
      %v2019 = vadd.f32 %v1875, %v2003
      %v2020 = vadd.f32 %v1876, %v2004
      %v2021 = vadd.f32 %v1877, %v2005
      %v2022 = vadd.f32 %v1878, %v2006
      %v2023 = vadd.f32 %v1879, %v2007
      %v2024 = vadd.f32 %v1880, %v2008
      %v2025 = vadd.f32 %v1881, %v2009
      %v2026 = vadd.f32 %v1882, %v2010
      %v2027 = vadd.f32 %v1883, %v2011
      %v2028 = vadd.f32 %v1884, %v2012
      %v2029 = vadd.f32 %v1885, %v2013
      %v2030 = vadd.f32 %v1886, %v2014
      %v2031 = vadd.f32 %v1887, %v2015
      %v2032 = vadd.f32 %v1888, %v2016
      %2033 = vst.msk [vmem:[%s378] sm:$0xff] %vm441, %v2017
      %2034 = vst.msk [vmem:[%s378 + $0x8] sm:$0xff] %vm441, %v2018
      %2035 = vst.msk [vmem:[%s378 + $0x10] sm:$0xff] %vm441, %v2019
      %2036 = vst.msk [vmem:[%s378 + $0x18] sm:$0xff] %vm441, %v2020
      %2037 = vst.msk [vmem:[%s378 + $0x20] sm:$0xff] %vm441, %v2021
      %2038 = vst.msk [vmem:[%s378 + $0x28] sm:$0xff] %vm441, %v2022
      %2039 = vst.msk [vmem:[%s378 + $0x30] sm:$0xff] %vm441, %v2023
      %2040 = vst.msk [vmem:[%s378 + $0x38] sm:$0xff] %vm441, %v2024
      %2041 = vst.msk [vmem:[%s378 + $0x40] sm:$0xff] %vm441, %v2025
      %2042 = vst.msk [vmem:[%s378 + $0x48] sm:$0xff] %vm441, %v2026
      %2043 = vst.msk [vmem:[%s378 + $0x50] sm:$0xff] %vm441, %v2027
      %2044 = vst.msk [vmem:[%s378 + $0x58] sm:$0xff] %vm441, %v2028
      %2045 = vst.msk [vmem:[%s378 + $0x60] sm:$0xff] %vm441, %v2029
      %2046 = vst.msk [vmem:[%s378 + $0x68] sm:$0xff] %vm441, %v2030
      %2047 = vst.msk [vmem:[%s378 + $0x70] sm:$0xff] %vm441, %v2031
      %2048 = vst.msk [vmem:[%s378 + $0x78] sm:$0xff] %vm441, %v2032
      %s2049 = smul.u32 16, %s20
      %p2050 = scmp.lt.s32.totalorder %s2049, 31
      %s2051 = scalar_select %p2050, %s2049, 31
      %s2052 = smul.addr %s2051, 8
      %s2053 = scalar_lea.vmem %s9, %s2052
      // Predicated region
      $region57: #{tpu_custom_call.1} parent=55 // pred_check
        %p2054 = pneg %p242
      $region58: #{tpu_custom_call.1} parent=55 // pred_check_branch
        %2056 = sbr.rel (%p2054) target = $region60
      $region59: #{tpu_custom_call.1} parent=55 // pred_region
        %s2057 = smul.u32 16, %s20
      $region60: #{tpu_custom_call.1} parent=55 // pred_fallthru
        _
    $region56: #{tpu_custom_call.1} parent=5 // pred_fallthru
      _
    %p2058 = scmp.le.s32.totalorder 2, %s15
    // Predicated region
    $region61: #{tpu_custom_call.1} parent=5 // pred_check
      %p2059 = pneg %p2058
    $region62: #{tpu_custom_call.1} parent=5 // pred_check_branch
      %2061 = sbr.rel (%p2059) target = $region64
    $region63: #{tpu_custom_call.1} parent=5 // pred_region
      %s2062 = ssub.s32 %s15, 2
      // Predicated region
      $region65: #{tpu_custom_call.1} parent=63 // pred_check
        %p2063 = pneg %p248
      $region66: #{tpu_custom_call.1} parent=63 // pred_check_branch
        %2065 = sbr.rel (%p2063) target = $region68
      $region67: #{tpu_custom_call.1} parent=63 // pred_region
        %s2066 = smul.u32 16, %s21
        %p2067 = scmp.lt.s32.totalorder %s2066, 31
        %s2068 = scalar_select %p2067, %s2066, 31
        %s2069 = smul.addr %s2068, 8
        %s2070 = scalar_lea.vmem %s9, %s2069
      $region68: #{tpu_custom_call.1} parent=63 // pred_fallthru
        _
    $region64: #{tpu_custom_call.1} parent=5 // pred_fallthru
      _
  $region6: #{tpu_custom_call.1} parent=0 // loop_footer
    %s19 = sadd.s32 1, %s15
  $region7: #{tpu_custom_call.1} parent=0 // loop_footer_branch
    %14 = sbr.rel target = $region3
  $region8: #{tpu_custom_call.1} parent=0 // loop_exit
    _

</llo_original>
